<compile_context>
chip_gen: v5e
topology: v5e:2x2
jax: 0.10.0
libtpu: 0.0.40
codegen_flags: <defaults>
</compile_context>

<pallas_src>
import jax
import jax.numpy as jnp
from jax.experimental import pallas as pl
from jax.experimental.pallas import tpu as pltpu


def _gru_fc_kernel(x_ref, h0_ref, w0_ref, w1_ref, b_ref, fc_ref, out_ref, hid_ref):
    """Whole forward pass in one invocation (no grid; everything VMEM-resident).

    x_ref  : (T*BP, I)   time-major input, batch padded to BP=8 rows per step
    h0_ref : (2, BP, H)  initial hidden states (padded batch)
    w0_ref : (I+H, 3H)   layer-0 slab: rows [Wih0_cat ; Whh0_cat], gate column blocks [r|z|n]
    w1_ref : (2H, 3H)    layer-1 slab: rows [Wih1_cat ; Whh1_cat]
    b_ref  : (4, 3H)     rows: [bgx0, bhh0, bgx1, bhh1] where
                         bgx = [b_ir+b_hr, b_iz+b_hz, b_in], bhh = [0, 0, b_hn]
    fc_ref : (H+1, O)    rows [fc_w.T ; fc_b]
    out_ref: (BP, O)     fc(top-layer last hidden)
    hid_ref: (2, BP, H)  final hidden states
    """
    H = hid_ref.shape[-1]
    BP = hid_ref.shape[1]
    T = x_ref.shape[0] // BP
    I = x_ref.shape[1]
    f32 = jnp.float32

    # ---- unpack packed slabs once (all slices sublane-aligned) ----
    w0 = w0_ref[...]
    wih0, whh0 = w0[:I], w0[I:]          # (I,3H), (H,3H)
    w1 = w1_ref[...]
    wih1, whh1 = w1[:H], w1[H:]          # (H,3H), (H,3H)
    b = b_ref[...]
    bgx0 = b[0:1]                        # (1,3H)
    bhh0 = jnp.broadcast_to(b[1:2], (BP, 3 * H))   # hoisted broadcasts (loop-invariant)
    bgx1 = jnp.broadcast_to(b[2:3], (BP, 3 * H))
    bhh1 = jnp.broadcast_to(b[3:4], (BP, 3 * H))
    fc = fc_ref[...]
    fcw, fcb = fc[:H], fc[H:]            # (H,O), (1,O)

    # ---- hoisted layer-0 input projection: one fused matmul over all timesteps ----
    gx0_all = jnp.dot(x_ref[...], wih0, preferred_element_type=f32) + bgx0   # (T*BP, 3H)

    def cell(gx, h, whh, bhh):
        # single fused recurrent matmul per step; bhh = [0,0,b_hn] so the n-block of gh
        # already carries b_hn inside r*(...) as torch requires.
        gh = jnp.dot(h, whh, preferred_element_type=f32) + bhh               # (BP, 3H)
        r = jax.nn.sigmoid(gx[:, :H] + gh[:, :H])
        z = jax.nn.sigmoid(gx[:, H:2 * H] + gh[:, H:2 * H])
        n = jnp.tanh(gx[:, 2 * H:] + r * gh[:, 2 * H:])
        return (1.0 - z) * n + z * h

    h0 = h0_ref[0]
    h1 = h0_ref[1]
    out0_prev = h0   # never read before being overwritten (t>=1 gate below)

    # ---- wavefront: layer-0 step t and layer-1 step t-1 in the same unrolled iteration ----
    # TODO(synk): if T grows large, switch to lax.fori_loop with bounded unroll + VMEM scratch
    # for per-step h, and tile T with a grid (vmem_limit_bytes) for v7x's 64 MiB VMEM.
    for t in range(T + 1):
        if t >= 1:
            # layer-1 consumes layer-0's output at step t-1 (stacked-GRU semantics preserved)
            gx1 = jnp.dot(out0_prev, wih1, preferred_element_type=f32) + bgx1
            h1 = cell(gx1, h1, whh1, bhh1)
        if t < T:
            h0 = cell(gx0_all[t * BP:(t + 1) * BP], h0, whh0, bhh0)
            out0_prev = h0

    hid_ref[0] = h0
    hid_ref[1] = h1
    # ---- fc on last timestep output of the top layer ----
    out_ref[...] = jnp.dot(h1, fcw, preferred_element_type=f32) + fcb


def gru_forward(x, hidden, params):
    """x: (B, T, input_size), hidden: (2, B, H). Returns (out (B, O), hidden (2, B, H))."""
    B, T, I = x.shape
    L, _, H = hidden.shape
    assert L == 2, "kernel is specialized for num_layers=2 (module default)"
    O = params["fc_w"].shape[0]
    BP = max(8, -(-B // 8) * 8)   # pad batch to a whole f32 sublane tile

    def gate_cat_T(w):
        # torch (3H, in) [r;z;n] -> (in, 3H) with gate column blocks [r | z | n]
        return jnp.concatenate([w[0:H].T, w[H:2 * H].T, w[2 * H:3 * H].T], axis=1)

    def bias_rows(bih, bhh):
        bgx = jnp.concatenate([bih[0:H] + bhh[0:H],
                               bih[H:2 * H] + bhh[H:2 * H],
                               bih[2 * H:3 * H]])
        bhn = jnp.concatenate([jnp.zeros((2 * H,), jnp.float32), bhh[2 * H:3 * H]])
        return bgx, bhn

    # time-major, batch padded to BP rows: row = t*BP + b
    x_tm = jnp.transpose(x, (1, 0, 2)).astype(jnp.float32)                    # (T, B, I)
    x_pad = jnp.zeros((T, BP, I), jnp.float32).at[:, :B, :].set(x_tm).reshape(T * BP, I)
    h_pad = jnp.zeros((L, BP, H), jnp.float32).at[:, :B, :].set(hidden.astype(jnp.float32))

    # packed operand slabs (6 DMAs total instead of 12)
    w0 = jnp.concatenate([gate_cat_T(params["w_ih0"]), gate_cat_T(params["w_hh0"])], axis=0)
    w1 = jnp.concatenate([gate_cat_T(params["w_ih1"]), gate_cat_T(params["w_hh1"])], axis=0)
    bgx0, bhh0 = bias_rows(params["b_ih0"], params["b_hh0"])
    bgx1, bhh1 = bias_rows(params["b_ih1"], params["b_hh1"])
    b_slab = jnp.stack([bgx0, bhh0, bgx1, bhh1])                              # (4, 3H)
    fc_slab = jnp.concatenate([params["fc_w"].T,
                               params["fc_b"][None, :].astype(jnp.float32)], axis=0)  # (H+1, O)

    # TODO(synk): at larger B, add a batch grid with dimension_semantics=("parallel",) so
    # v7x's two TensorCores each run part of the batch; cast matmul operands to bf16 on
    # v6e/v7x once H >= 128 (keep elementwise math f32 for v5e).
    vmem = pl.BlockSpec(memory_space=pltpu.MemorySpace.VMEM)
    out_p, hid_p = pl.pallas_call(
        _gru_fc_kernel,
        out_shape=(jax.ShapeDtypeStruct((BP, O), jnp.float32),
                   jax.ShapeDtypeStruct((L, BP, H), jnp.float32)),
        in_specs=[vmem] * 6,
        out_specs=(vmem, vmem),
    )(x_pad, h_pad, w0, w1, b_slab, fc_slab)
    return out_p[:B], hid_p[:, :B]


def init_params(key, input_size, hidden_size, output_size):
    """Deterministic init matching PyTorch shapes: U(-1/sqrt(H), 1/sqrt(H))."""
    k = 1.0 / float(hidden_size) ** 0.5
    keys = jax.random.split(key, 10)

    def u(kk, shape):
        return jax.random.uniform(kk, shape, jnp.float32, -k, k)

    H, I, O = hidden_size, input_size, output_size
    return {
        "w_ih0": u(keys[0], (3 * H, I)),
        "w_hh0": u(keys[1], (3 * H, H)),
        "b_ih0": u(keys[2], (3 * H,)),
        "b_hh0": u(keys[3], (3 * H,)),
        "w_ih1": u(keys[4], (3 * H, H)),
        "w_hh1": u(keys[5], (3 * H, H)),
        "b_ih1": u(keys[6], (3 * H,)),
        "b_hh1": u(keys[7], (3 * H,)),
        "fc_w": u(keys[8], (O, H)),
        "fc_b": u(keys[9], (O,)),
    }


def gru_ref(x, hidden, p):
    """Pure-JAX reference replicating torch.nn.GRU(batch_first=True) + Linear."""
    B, T, _ = x.shape
    H = hidden.shape[-1]

    def cell(x_t, h, wih, whh, bih, bhh):
        gx = x_t @ wih.T + bih
        gh = h @ whh.T + bhh
        r = jax.nn.sigmoid(gx[:, :H] + gh[:, :H])
        z = jax.nn.sigmoid(gx[:, H:2 * H] + gh[:, H:2 * H])
        n = jnp.tanh(gx[:, 2 * H:] + r * gh[:, 2 * H:])
        return (1.0 - z) * n + z * h

    h0, h1 = hidden[0], hidden[1]
    for t in range(T):
        h0 = cell(x[:, t], h0, p["w_ih0"], p["w_hh0"], p["b_ih0"], p["b_hh0"])
        h1 = cell(h0, h1, p["w_ih1"], p["w_hh1"], p["b_ih1"], p["b_hh1"])
    out = h1 @ p["fc_w"].T + p["fc_b"]
    return out, jnp.stack([h0, h1])


if __name__ == "__main__":
    B, T = 2, 8
    INPUT_SIZE, HIDDEN_SIZE, OUTPUT_SIZE, NUM_LAYERS = 8, 32, 4, 2

    key = jax.random.PRNGKey(0)
    k_x, k_p = jax.random.split(key)

    x = jax.random.normal(k_x, (B, T, INPUT_SIZE), jnp.float32)
    hidden = jnp.zeros((NUM_LAYERS, B, HIDDEN_SIZE), jnp.float32)  # reset_hidden_state
    params = init_params(k_p, INPUT_SIZE, HIDDEN_SIZE, OUTPUT_SIZE)

    out, hid = jax.block_until_ready(gru_forward(x, hidden, params))

    out_ref, hid_ref = gru_ref(x, hidden, params)
    assert out.shape == (B, OUTPUT_SIZE) and hid.shape == (NUM_LAYERS, B, HIDDEN_SIZE)
    assert jnp.allclose(out, out_ref, rtol=1e-4, atol=1e-4)
    assert jnp.allclose(hid, hid_ref, rtol=1e-4, atol=1e-4)

    print("KERNEL_OK")
</pallas_src>

<mosaic_0001>
module attributes {stable_mosaic.version = 11 : i64} {
  func.func @_gru_fc_kernel(%arg0: memref<64x8xf32, #tpu.memory_space<vmem>>, %arg1: memref<2x8x32xf32, #tpu.memory_space<vmem>>, %arg2: memref<40x96xf32, #tpu.memory_space<vmem>>, %arg3: memref<64x96xf32, #tpu.memory_space<vmem>>, %arg4: memref<4x96xf32, #tpu.memory_space<vmem>>, %arg5: memref<33x4xf32, #tpu.memory_space<vmem>>, %arg6: memref<8x4xf32, #tpu.memory_space<vmem>>, %arg7: memref<2x8x32xf32, #tpu.memory_space<vmem>>) attributes {dimension_semantics = [], scalar_prefetch = 0 : i64, scratch_operands = 0 : i64, tpu.core_type = #tpu.core_type<tc>} {
    %c0 = arith.constant 0 : index
    %c0_0 = arith.constant 0 : index
    %0 = vector.load %arg2[%c0, %c0_0] : memref<40x96xf32, #tpu.memory_space<vmem>>, vector<40x96xf32>
    %1 = vector.extract_strided_slice %0 {offsets = [0, 0], sizes = [8, 96], strides = [1, 1]} : vector<40x96xf32> to vector<8x96xf32>
    %2 = vector.extract_strided_slice %0 {offsets = [8, 0], sizes = [32, 96], strides = [1, 1]} : vector<40x96xf32> to vector<32x96xf32>
    %c0_1 = arith.constant 0 : index
    %c0_2 = arith.constant 0 : index
    %3 = vector.load %arg3[%c0_1, %c0_2] : memref<64x96xf32, #tpu.memory_space<vmem>>, vector<64x96xf32>
    %4 = vector.extract_strided_slice %3 {offsets = [0, 0], sizes = [32, 96], strides = [1, 1]} : vector<64x96xf32> to vector<32x96xf32>
    %5 = vector.extract_strided_slice %3 {offsets = [32, 0], sizes = [32, 96], strides = [1, 1]} : vector<64x96xf32> to vector<32x96xf32>
    %c0_3 = arith.constant 0 : index
    %c0_4 = arith.constant 0 : index
    %6 = vector.load %arg4[%c0_3, %c0_4] : memref<4x96xf32, #tpu.memory_space<vmem>>, vector<4x96xf32>
    %7 = vector.extract_strided_slice %6 {offsets = [0, 0], sizes = [1, 96], strides = [1, 1]} : vector<4x96xf32> to vector<1x96xf32>
    %8 = vector.extract_strided_slice %6 {offsets = [1, 0], sizes = [1, 96], strides = [1, 1]} : vector<4x96xf32> to vector<1x96xf32>
    %9 = vector.shape_cast %8 : vector<1x96xf32> to vector<1x96xf32>
    %10 = vector.broadcast %9 : vector<1x96xf32> to vector<8x96xf32>
    %11 = vector.extract_strided_slice %6 {offsets = [2, 0], sizes = [1, 96], strides = [1, 1]} : vector<4x96xf32> to vector<1x96xf32>
    %12 = vector.shape_cast %11 : vector<1x96xf32> to vector<1x96xf32>
    %13 = vector.broadcast %12 : vector<1x96xf32> to vector<8x96xf32>
    %14 = vector.extract_strided_slice %6 {offsets = [3, 0], sizes = [1, 96], strides = [1, 1]} : vector<4x96xf32> to vector<1x96xf32>
    %15 = vector.shape_cast %14 : vector<1x96xf32> to vector<1x96xf32>
    %16 = vector.broadcast %15 : vector<1x96xf32> to vector<8x96xf32>
    %c0_5 = arith.constant 0 : index
    %c0_6 = arith.constant 0 : index
    %17 = vector.load %arg5[%c0_5, %c0_6] : memref<33x4xf32, #tpu.memory_space<vmem>>, vector<33x4xf32>
    %18 = vector.extract_strided_slice %17 {offsets = [0, 0], sizes = [32, 4], strides = [1, 1]} : vector<33x4xf32> to vector<32x4xf32>
    %19 = vector.extract_strided_slice %17 {offsets = [32, 0], sizes = [1, 4], strides = [1, 1]} : vector<33x4xf32> to vector<1x4xf32>
    %c0_7 = arith.constant 0 : index
    %c0_8 = arith.constant 0 : index
    %20 = vector.load %arg0[%c0_7, %c0_8] : memref<64x8xf32, #tpu.memory_space<vmem>>, vector<64x8xf32>
    %cst = arith.constant dense<0.000000e+00> : vector<64x96xf32>
    %21 = tpu.matmul %20, %1, %cst {dimension_numbers = #tpu.dot_dimension_numbers<[1], [0], [0], [1], [0, 0, 1, 1], [], []>} : vector<64x8xf32>, vector<8x96xf32>, vector<64x96xf32> -> vector<64x96xf32>
    %22 = vector.broadcast %7 : vector<1x96xf32> to vector<64x96xf32>
    %23 = arith.addf %21, %22 : vector<64x96xf32>
    %c0_9 = arith.constant 0 : index
    %c0_10 = arith.constant 0 : index
    %c0_11 = arith.constant 0 : index
    %24 = vector.load %arg1[%c0_9, %c0_10, %c0_11] : memref<2x8x32xf32, #tpu.memory_space<vmem>>, vector<1x8x32xf32>
    %25 = vector.shape_cast %24 : vector<1x8x32xf32> to vector<8x32xf32>
    %c1 = arith.constant 1 : index
    %c0_12 = arith.constant 0 : index
    %c0_13 = arith.constant 0 : index
    %26 = vector.load %arg1[%c1, %c0_12, %c0_13] : memref<2x8x32xf32, #tpu.memory_space<vmem>>, vector<1x8x32xf32>
    %27 = vector.shape_cast %26 : vector<1x8x32xf32> to vector<8x32xf32>
    %28 = vector.extract_strided_slice %23 {offsets = [0, 0], sizes = [8, 96], strides = [1, 1]} : vector<64x96xf32> to vector<8x96xf32>
    %cst_14 = arith.constant dense<0.000000e+00> : vector<8x96xf32>
    %29 = tpu.matmul %25, %2, %cst_14 {dimension_numbers = #tpu.dot_dimension_numbers<[1], [0], [0], [1], [0, 0, 1, 1], [], []>} : vector<8x32xf32>, vector<32x96xf32>, vector<8x96xf32> -> vector<8x96xf32>
    %30 = arith.addf %29, %10 : vector<8x96xf32>
    %31 = vector.extract_strided_slice %28 {offsets = [0, 0], sizes = [8, 32], strides = [1, 1]} : vector<8x96xf32> to vector<8x32xf32>
    %32 = vector.extract_strided_slice %30 {offsets = [0, 0], sizes = [8, 32], strides = [1, 1]} : vector<8x96xf32> to vector<8x32xf32>
    %33 = arith.addf %31, %32 : vector<8x32xf32>
    %34 = arith.negf %33 : vector<8x32xf32>
    %35 = math.exp %34 : vector<8x32xf32>
    %cst_15 = arith.constant 1.000000e+00 : f32
    %36 = vector.broadcast %cst_15 : f32 to vector<8x32xf32>
    %37 = arith.addf %36, %35 : vector<8x32xf32>
    %38 = arith.divf %36, %37 : vector<8x32xf32>
    %39 = vector.extract_strided_slice %28 {offsets = [0, 32], sizes = [8, 32], strides = [1, 1]} : vector<8x96xf32> to vector<8x32xf32>
    %40 = vector.extract_strided_slice %30 {offsets = [0, 32], sizes = [8, 32], strides = [1, 1]} : vector<8x96xf32> to vector<8x32xf32>
    %41 = arith.addf %39, %40 : vector<8x32xf32>
    %42 = arith.negf %41 : vector<8x32xf32>
    %43 = math.exp %42 : vector<8x32xf32>
    %cst_16 = arith.constant 1.000000e+00 : f32
    %44 = vector.broadcast %cst_16 : f32 to vector<8x32xf32>
    %45 = arith.addf %44, %43 : vector<8x32xf32>
    %46 = arith.divf %44, %45 : vector<8x32xf32>
    %47 = vector.extract_strided_slice %28 {offsets = [0, 64], sizes = [8, 32], strides = [1, 1]} : vector<8x96xf32> to vector<8x32xf32>
    %48 = vector.extract_strided_slice %30 {offsets = [0, 64], sizes = [8, 32], strides = [1, 1]} : vector<8x96xf32> to vector<8x32xf32>
    %49 = arith.mulf %38, %48 : vector<8x32xf32>
    %50 = arith.addf %47, %49 : vector<8x32xf32>
    %51 = math.tanh %50 : vector<8x32xf32>
    %cst_17 = arith.constant 1.000000e+00 : f32
    %52 = vector.broadcast %cst_17 : f32 to vector<8x32xf32>
    %53 = arith.subf %52, %46 : vector<8x32xf32>
    %54 = arith.mulf %53, %51 : vector<8x32xf32>
    %55 = arith.mulf %46, %25 : vector<8x32xf32>
    %56 = arith.addf %54, %55 : vector<8x32xf32>
    %cst_18 = arith.constant dense<0.000000e+00> : vector<8x96xf32>
    %57 = tpu.matmul %56, %4, %cst_18 {dimension_numbers = #tpu.dot_dimension_numbers<[1], [0], [0], [1], [0, 0, 1, 1], [], []>} : vector<8x32xf32>, vector<32x96xf32>, vector<8x96xf32> -> vector<8x96xf32>
    %58 = arith.addf %57, %13 : vector<8x96xf32>
    %cst_19 = arith.constant dense<0.000000e+00> : vector<8x96xf32>
    %59 = tpu.matmul %27, %5, %cst_19 {dimension_numbers = #tpu.dot_dimension_numbers<[1], [0], [0], [1], [0, 0, 1, 1], [], []>} : vector<8x32xf32>, vector<32x96xf32>, vector<8x96xf32> -> vector<8x96xf32>
    %60 = arith.addf %59, %16 : vector<8x96xf32>
    %61 = vector.extract_strided_slice %58 {offsets = [0, 0], sizes = [8, 32], strides = [1, 1]} : vector<8x96xf32> to vector<8x32xf32>
    %62 = vector.extract_strided_slice %60 {offsets = [0, 0], sizes = [8, 32], strides = [1, 1]} : vector<8x96xf32> to vector<8x32xf32>
    %63 = arith.addf %61, %62 : vector<8x32xf32>
    %64 = arith.negf %63 : vector<8x32xf32>
    %65 = math.exp %64 : vector<8x32xf32>
    %cst_20 = arith.constant 1.000000e+00 : f32
    %66 = vector.broadcast %cst_20 : f32 to vector<8x32xf32>
    %67 = arith.addf %66, %65 : vector<8x32xf32>
    %68 = arith.divf %66, %67 : vector<8x32xf32>
    %69 = vector.extract_strided_slice %58 {offsets = [0, 32], sizes = [8, 32], strides = [1, 1]} : vector<8x96xf32> to vector<8x32xf32>
    %70 = vector.extract_strided_slice %60 {offsets = [0, 32], sizes = [8, 32], strides = [1, 1]} : vector<8x96xf32> to vector<8x32xf32>
    %71 = arith.addf %69, %70 : vector<8x32xf32>
    %72 = arith.negf %71 : vector<8x32xf32>
    %73 = math.exp %72 : vector<8x32xf32>
    %cst_21 = arith.constant 1.000000e+00 : f32
    %74 = vector.broadcast %cst_21 : f32 to vector<8x32xf32>
    %75 = arith.addf %74, %73 : vector<8x32xf32>
    %76 = arith.divf %74, %75 : vector<8x32xf32>
    %77 = vector.extract_strided_slice %58 {offsets = [0, 64], sizes = [8, 32], strides = [1, 1]} : vector<8x96xf32> to vector<8x32xf32>
    %78 = vector.extract_strided_slice %60 {offsets = [0, 64], sizes = [8, 32], strides = [1, 1]} : vector<8x96xf32> to vector<8x32xf32>
    %79 = arith.mulf %68, %78 : vector<8x32xf32>
    %80 = arith.addf %77, %79 : vector<8x32xf32>
    %81 = math.tanh %80 : vector<8x32xf32>
    %cst_22 = arith.constant 1.000000e+00 : f32
    %82 = vector.broadcast %cst_22 : f32 to vector<8x32xf32>
    %83 = arith.subf %82, %76 : vector<8x32xf32>
    %84 = arith.mulf %83, %81 : vector<8x32xf32>
    %85 = arith.mulf %76, %27 : vector<8x32xf32>
    %86 = arith.addf %84, %85 : vector<8x32xf32>
    %87 = vector.extract_strided_slice %23 {offsets = [8, 0], sizes = [8, 96], strides = [1, 1]} : vector<64x96xf32> to vector<8x96xf32>
    %cst_23 = arith.constant dense<0.000000e+00> : vector<8x96xf32>
    %88 = tpu.matmul %56, %2, %cst_23 {dimension_numbers = #tpu.dot_dimension_numbers<[1], [0], [0], [1], [0, 0, 1, 1], [], []>} : vector<8x32xf32>, vector<32x96xf32>, vector<8x96xf32> -> vector<8x96xf32>
    %89 = arith.addf %88, %10 : vector<8x96xf32>
    %90 = vector.extract_strided_slice %87 {offsets = [0, 0], sizes = [8, 32], strides = [1, 1]} : vector<8x96xf32> to vector<8x32xf32>
    %91 = vector.extract_strided_slice %89 {offsets = [0, 0], sizes = [8, 32], strides = [1, 1]} : vector<8x96xf32> to vector<8x32xf32>
    %92 = arith.addf %90, %91 : vector<8x32xf32>
    %93 = arith.negf %92 : vector<8x32xf32>
    %94 = math.exp %93 : vector<8x32xf32>
    %cst_24 = arith.constant 1.000000e+00 : f32
    %95 = vector.broadcast %cst_24 : f32 to vector<8x32xf32>
    %96 = arith.addf %95, %94 : vector<8x32xf32>
    %97 = arith.divf %95, %96 : vector<8x32xf32>
    %98 = vector.extract_strided_slice %87 {offsets = [0, 32], sizes = [8, 32], strides = [1, 1]} : vector<8x96xf32> to vector<8x32xf32>
    %99 = vector.extract_strided_slice %89 {offsets = [0, 32], sizes = [8, 32], strides = [1, 1]} : vector<8x96xf32> to vector<8x32xf32>
    %100 = arith.addf %98, %99 : vector<8x32xf32>
    %101 = arith.negf %100 : vector<8x32xf32>
    %102 = math.exp %101 : vector<8x32xf32>
    %cst_25 = arith.constant 1.000000e+00 : f32
    %103 = vector.broadcast %cst_25 : f32 to vector<8x32xf32>
    %104 = arith.addf %103, %102 : vector<8x32xf32>
    %105 = arith.divf %103, %104 : vector<8x32xf32>
    %106 = vector.extract_strided_slice %87 {offsets = [0, 64], sizes = [8, 32], strides = [1, 1]} : vector<8x96xf32> to vector<8x32xf32>
    %107 = vector.extract_strided_slice %89 {offsets = [0, 64], sizes = [8, 32], strides = [1, 1]} : vector<8x96xf32> to vector<8x32xf32>
    %108 = arith.mulf %97, %107 : vector<8x32xf32>
    %109 = arith.addf %106, %108 : vector<8x32xf32>
    %110 = math.tanh %109 : vector<8x32xf32>
    %cst_26 = arith.constant 1.000000e+00 : f32
    %111 = vector.broadcast %cst_26 : f32 to vector<8x32xf32>
    %112 = arith.subf %111, %105 : vector<8x32xf32>
    %113 = arith.mulf %112, %110 : vector<8x32xf32>
    %114 = arith.mulf %105, %56 : vector<8x32xf32>
    %115 = arith.addf %113, %114 : vector<8x32xf32>
    %cst_27 = arith.constant dense<0.000000e+00> : vector<8x96xf32>
    %116 = tpu.matmul %115, %4, %cst_27 {dimension_numbers = #tpu.dot_dimension_numbers<[1], [0], [0], [1], [0, 0, 1, 1], [], []>} : vector<8x32xf32>, vector<32x96xf32>, vector<8x96xf32> -> vector<8x96xf32>
    %117 = arith.addf %116, %13 : vector<8x96xf32>
    %cst_28 = arith.constant dense<0.000000e+00> : vector<8x96xf32>
    %118 = tpu.matmul %86, %5, %cst_28 {dimension_numbers = #tpu.dot_dimension_numbers<[1], [0], [0], [1], [0, 0, 1, 1], [], []>} : vector<8x32xf32>, vector<32x96xf32>, vector<8x96xf32> -> vector<8x96xf32>
    %119 = arith.addf %118, %16 : vector<8x96xf32>
    %120 = vector.extract_strided_slice %117 {offsets = [0, 0], sizes = [8, 32], strides = [1, 1]} : vector<8x96xf32> to vector<8x32xf32>
    %121 = vector.extract_strided_slice %119 {offsets = [0, 0], sizes = [8, 32], strides = [1, 1]} : vector<8x96xf32> to vector<8x32xf32>
    %122 = arith.addf %120, %121 : vector<8x32xf32>
    %123 = arith.negf %122 : vector<8x32xf32>
    %124 = math.exp %123 : vector<8x32xf32>
    %cst_29 = arith.constant 1.000000e+00 : f32
    %125 = vector.broadcast %cst_29 : f32 to vector<8x32xf32>
    %126 = arith.addf %125, %124 : vector<8x32xf32>
    %127 = arith.divf %125, %126 : vector<8x32xf32>
    %128 = vector.extract_strided_slice %117 {offsets = [0, 32], sizes = [8, 32], strides = [1, 1]} : vector<8x96xf32> to vector<8x32xf32>
    %129 = vector.extract_strided_slice %119 {offsets = [0, 32], sizes = [8, 32], strides = [1, 1]} : vector<8x96xf32> to vector<8x32xf32>
    %130 = arith.addf %128, %129 : vector<8x32xf32>
    %131 = arith.negf %130 : vector<8x32xf32>
    %132 = math.exp %131 : vector<8x32xf32>
    %cst_30 = arith.constant 1.000000e+00 : f32
    %133 = vector.broadcast %cst_30 : f32 to vector<8x32xf32>
    %134 = arith.addf %133, %132 : vector<8x32xf32>
    %135 = arith.divf %133, %134 : vector<8x32xf32>
    %136 = vector.extract_strided_slice %117 {offsets = [0, 64], sizes = [8, 32], strides = [1, 1]} : vector<8x96xf32> to vector<8x32xf32>
    %137 = vector.extract_strided_slice %119 {offsets = [0, 64], sizes = [8, 32], strides = [1, 1]} : vector<8x96xf32> to vector<8x32xf32>
    %138 = arith.mulf %127, %137 : vector<8x32xf32>
    %139 = arith.addf %136, %138 : vector<8x32xf32>
    %140 = math.tanh %139 : vector<8x32xf32>
    %cst_31 = arith.constant 1.000000e+00 : f32
    %141 = vector.broadcast %cst_31 : f32 to vector<8x32xf32>
    %142 = arith.subf %141, %135 : vector<8x32xf32>
    %143 = arith.mulf %142, %140 : vector<8x32xf32>
    %144 = arith.mulf %135, %86 : vector<8x32xf32>
    %145 = arith.addf %143, %144 : vector<8x32xf32>
    %146 = vector.extract_strided_slice %23 {offsets = [16, 0], sizes = [8, 96], strides = [1, 1]} : vector<64x96xf32> to vector<8x96xf32>
    %cst_32 = arith.constant dense<0.000000e+00> : vector<8x96xf32>
    %147 = tpu.matmul %115, %2, %cst_32 {dimension_numbers = #tpu.dot_dimension_numbers<[1], [0], [0], [1], [0, 0, 1, 1], [], []>} : vector<8x32xf32>, vector<32x96xf32>, vector<8x96xf32> -> vector<8x96xf32>
    %148 = arith.addf %147, %10 : vector<8x96xf32>
    %149 = vector.extract_strided_slice %146 {offsets = [0, 0], sizes = [8, 32], strides = [1, 1]} : vector<8x96xf32> to vector<8x32xf32>
    %150 = vector.extract_strided_slice %148 {offsets = [0, 0], sizes = [8, 32], strides = [1, 1]} : vector<8x96xf32> to vector<8x32xf32>
    %151 = arith.addf %149, %150 : vector<8x32xf32>
    %152 = arith.negf %151 : vector<8x32xf32>
    %153 = math.exp %152 : vector<8x32xf32>
    %cst_33 = arith.constant 1.000000e+00 : f32
    %154 = vector.broadcast %cst_33 : f32 to vector<8x32xf32>
    %155 = arith.addf %154, %153 : vector<8x32xf32>
    %156 = arith.divf %154, %155 : vector<8x32xf32>
    %157 = vector.extract_strided_slice %146 {offsets = [0, 32], sizes = [8, 32], strides = [1, 1]} : vector<8x96xf32> to vector<8x32xf32>
    %158 = vector.extract_strided_slice %148 {offsets = [0, 32], sizes = [8, 32], strides = [1, 1]} : vector<8x96xf32> to vector<8x32xf32>
    %159 = arith.addf %157, %158 : vector<8x32xf32>
    %160 = arith.negf %159 : vector<8x32xf32>
    %161 = math.exp %160 : vector<8x32xf32>
    %cst_34 = arith.constant 1.000000e+00 : f32
    %162 = vector.broadcast %cst_34 : f32 to vector<8x32xf32>
    %163 = arith.addf %162, %161 : vector<8x32xf32>
    %164 = arith.divf %162, %163 : vector<8x32xf32>
    %165 = vector.extract_strided_slice %146 {offsets = [0, 64], sizes = [8, 32], strides = [1, 1]} : vector<8x96xf32> to vector<8x32xf32>
    %166 = vector.extract_strided_slice %148 {offsets = [0, 64], sizes = [8, 32], strides = [1, 1]} : vector<8x96xf32> to vector<8x32xf32>
    %167 = arith.mulf %156, %166 : vector<8x32xf32>
    %168 = arith.addf %165, %167 : vector<8x32xf32>
    %169 = math.tanh %168 : vector<8x32xf32>
    %cst_35 = arith.constant 1.000000e+00 : f32
    %170 = vector.broadcast %cst_35 : f32 to vector<8x32xf32>
    %171 = arith.subf %170, %164 : vector<8x32xf32>
    %172 = arith.mulf %171, %169 : vector<8x32xf32>
    %173 = arith.mulf %164, %115 : vector<8x32xf32>
    %174 = arith.addf %172, %173 : vector<8x32xf32>
    %cst_36 = arith.constant dense<0.000000e+00> : vector<8x96xf32>
    %175 = tpu.matmul %174, %4, %cst_36 {dimension_numbers = #tpu.dot_dimension_numbers<[1], [0], [0], [1], [0, 0, 1, 1], [], []>} : vector<8x32xf32>, vector<32x96xf32>, vector<8x96xf32> -> vector<8x96xf32>
    %176 = arith.addf %175, %13 : vector<8x96xf32>
    %cst_37 = arith.constant dense<0.000000e+00> : vector<8x96xf32>
    %177 = tpu.matmul %145, %5, %cst_37 {dimension_numbers = #tpu.dot_dimension_numbers<[1], [0], [0], [1], [0, 0, 1, 1], [], []>} : vector<8x32xf32>, vector<32x96xf32>, vector<8x96xf32> -> vector<8x96xf32>
    %178 = arith.addf %177, %16 : vector<8x96xf32>
    %179 = vector.extract_strided_slice %176 {offsets = [0, 0], sizes = [8, 32], strides = [1, 1]} : vector<8x96xf32> to vector<8x32xf32>
    %180 = vector.extract_strided_slice %178 {offsets = [0, 0], sizes = [8, 32], strides = [1, 1]} : vector<8x96xf32> to vector<8x32xf32>
    %181 = arith.addf %179, %180 : vector<8x32xf32>
    %182 = arith.negf %181 : vector<8x32xf32>
    %183 = math.exp %182 : vector<8x32xf32>
    %cst_38 = arith.constant 1.000000e+00 : f32
    %184 = vector.broadcast %cst_38 : f32 to vector<8x32xf32>
    %185 = arith.addf %184, %183 : vector<8x32xf32>
    %186 = arith.divf %184, %185 : vector<8x32xf32>
    %187 = vector.extract_strided_slice %176 {offsets = [0, 32], sizes = [8, 32], strides = [1, 1]} : vector<8x96xf32> to vector<8x32xf32>
    %188 = vector.extract_strided_slice %178 {offsets = [0, 32], sizes = [8, 32], strides = [1, 1]} : vector<8x96xf32> to vector<8x32xf32>
    %189 = arith.addf %187, %188 : vector<8x32xf32>
    %190 = arith.negf %189 : vector<8x32xf32>
    %191 = math.exp %190 : vector<8x32xf32>
    %cst_39 = arith.constant 1.000000e+00 : f32
    %192 = vector.broadcast %cst_39 : f32 to vector<8x32xf32>
    %193 = arith.addf %192, %191 : vector<8x32xf32>
    %194 = arith.divf %192, %193 : vector<8x32xf32>
    %195 = vector.extract_strided_slice %176 {offsets = [0, 64], sizes = [8, 32], strides = [1, 1]} : vector<8x96xf32> to vector<8x32xf32>
    %196 = vector.extract_strided_slice %178 {offsets = [0, 64], sizes = [8, 32], strides = [1, 1]} : vector<8x96xf32> to vector<8x32xf32>
    %197 = arith.mulf %186, %196 : vector<8x32xf32>
    %198 = arith.addf %195, %197 : vector<8x32xf32>
    %199 = math.tanh %198 : vector<8x32xf32>
    %cst_40 = arith.constant 1.000000e+00 : f32
    %200 = vector.broadcast %cst_40 : f32 to vector<8x32xf32>
    %201 = arith.subf %200, %194 : vector<8x32xf32>
    %202 = arith.mulf %201, %199 : vector<8x32xf32>
    %203 = arith.mulf %194, %145 : vector<8x32xf32>
    %204 = arith.addf %202, %203 : vector<8x32xf32>
    %205 = vector.extract_strided_slice %23 {offsets = [24, 0], sizes = [8, 96], strides = [1, 1]} : vector<64x96xf32> to vector<8x96xf32>
    %cst_41 = arith.constant dense<0.000000e+00> : vector<8x96xf32>
    %206 = tpu.matmul %174, %2, %cst_41 {dimension_numbers = #tpu.dot_dimension_numbers<[1], [0], [0], [1], [0, 0, 1, 1], [], []>} : vector<8x32xf32>, vector<32x96xf32>, vector<8x96xf32> -> vector<8x96xf32>
    %207 = arith.addf %206, %10 : vector<8x96xf32>
    %208 = vector.extract_strided_slice %205 {offsets = [0, 0], sizes = [8, 32], strides = [1, 1]} : vector<8x96xf32> to vector<8x32xf32>
    %209 = vector.extract_strided_slice %207 {offsets = [0, 0], sizes = [8, 32], strides = [1, 1]} : vector<8x96xf32> to vector<8x32xf32>
    %210 = arith.addf %208, %209 : vector<8x32xf32>
    %211 = arith.negf %210 : vector<8x32xf32>
    %212 = math.exp %211 : vector<8x32xf32>
    %cst_42 = arith.constant 1.000000e+00 : f32
    %213 = vector.broadcast %cst_42 : f32 to vector<8x32xf32>
    %214 = arith.addf %213, %212 : vector<8x32xf32>
    %215 = arith.divf %213, %214 : vector<8x32xf32>
    %216 = vector.extract_strided_slice %205 {offsets = [0, 32], sizes = [8, 32], strides = [1, 1]} : vector<8x96xf32> to vector<8x32xf32>
    %217 = vector.extract_strided_slice %207 {offsets = [0, 32], sizes = [8, 32], strides = [1, 1]} : vector<8x96xf32> to vector<8x32xf32>
    %218 = arith.addf %216, %217 : vector<8x32xf32>
    %219 = arith.negf %218 : vector<8x32xf32>
    %220 = math.exp %219 : vector<8x32xf32>
    %cst_43 = arith.constant 1.000000e+00 : f32
    %221 = vector.broadcast %cst_43 : f32 to vector<8x32xf32>
    %222 = arith.addf %221, %220 : vector<8x32xf32>
    %223 = arith.divf %221, %222 : vector<8x32xf32>
    %224 = vector.extract_strided_slice %205 {offsets = [0, 64], sizes = [8, 32], strides = [1, 1]} : vector<8x96xf32> to vector<8x32xf32>
    %225 = vector.extract_strided_slice %207 {offsets = [0, 64], sizes = [8, 32], strides = [1, 1]} : vector<8x96xf32> to vector<8x32xf32>
    %226 = arith.mulf %215, %225 : vector<8x32xf32>
    %227 = arith.addf %224, %226 : vector<8x32xf32>
    %228 = math.tanh %227 : vector<8x32xf32>
    %cst_44 = arith.constant 1.000000e+00 : f32
    %229 = vector.broadcast %cst_44 : f32 to vector<8x32xf32>
    %230 = arith.subf %229, %223 : vector<8x32xf32>
    %231 = arith.mulf %230, %228 : vector<8x32xf32>
    %232 = arith.mulf %223, %174 : vector<8x32xf32>
    %233 = arith.addf %231, %232 : vector<8x32xf32>
    %cst_45 = arith.constant dense<0.000000e+00> : vector<8x96xf32>
    %234 = tpu.matmul %233, %4, %cst_45 {dimension_numbers = #tpu.dot_dimension_numbers<[1], [0], [0], [1], [0, 0, 1, 1], [], []>} : vector<8x32xf32>, vector<32x96xf32>, vector<8x96xf32> -> vector<8x96xf32>
    %235 = arith.addf %234, %13 : vector<8x96xf32>
    %cst_46 = arith.constant dense<0.000000e+00> : vector<8x96xf32>
    %236 = tpu.matmul %204, %5, %cst_46 {dimension_numbers = #tpu.dot_dimension_numbers<[1], [0], [0], [1], [0, 0, 1, 1], [], []>} : vector<8x32xf32>, vector<32x96xf32>, vector<8x96xf32> -> vector<8x96xf32>
    %237 = arith.addf %236, %16 : vector<8x96xf32>
    %238 = vector.extract_strided_slice %235 {offsets = [0, 0], sizes = [8, 32], strides = [1, 1]} : vector<8x96xf32> to vector<8x32xf32>
    %239 = vector.extract_strided_slice %237 {offsets = [0, 0], sizes = [8, 32], strides = [1, 1]} : vector<8x96xf32> to vector<8x32xf32>
    %240 = arith.addf %238, %239 : vector<8x32xf32>
    %241 = arith.negf %240 : vector<8x32xf32>
    %242 = math.exp %241 : vector<8x32xf32>
    %cst_47 = arith.constant 1.000000e+00 : f32
    %243 = vector.broadcast %cst_47 : f32 to vector<8x32xf32>
    %244 = arith.addf %243, %242 : vector<8x32xf32>
    %245 = arith.divf %243, %244 : vector<8x32xf32>
    %246 = vector.extract_strided_slice %235 {offsets = [0, 32], sizes = [8, 32], strides = [1, 1]} : vector<8x96xf32> to vector<8x32xf32>
    %247 = vector.extract_strided_slice %237 {offsets = [0, 32], sizes = [8, 32], strides = [1, 1]} : vector<8x96xf32> to vector<8x32xf32>
    %248 = arith.addf %246, %247 : vector<8x32xf32>
    %249 = arith.negf %248 : vector<8x32xf32>
    %250 = math.exp %249 : vector<8x32xf32>
    %cst_48 = arith.constant 1.000000e+00 : f32
    %251 = vector.broadcast %cst_48 : f32 to vector<8x32xf32>
    %252 = arith.addf %251, %250 : vector<8x32xf32>
    %253 = arith.divf %251, %252 : vector<8x32xf32>
    %254 = vector.extract_strided_slice %235 {offsets = [0, 64], sizes = [8, 32], strides = [1, 1]} : vector<8x96xf32> to vector<8x32xf32>
    %255 = vector.extract_strided_slice %237 {offsets = [0, 64], sizes = [8, 32], strides = [1, 1]} : vector<8x96xf32> to vector<8x32xf32>
    %256 = arith.mulf %245, %255 : vector<8x32xf32>
    %257 = arith.addf %254, %256 : vector<8x32xf32>
    %258 = math.tanh %257 : vector<8x32xf32>
    %cst_49 = arith.constant 1.000000e+00 : f32
    %259 = vector.broadcast %cst_49 : f32 to vector<8x32xf32>
    %260 = arith.subf %259, %253 : vector<8x32xf32>
    %261 = arith.mulf %260, %258 : vector<8x32xf32>
    %262 = arith.mulf %253, %204 : vector<8x32xf32>
    %263 = arith.addf %261, %262 : vector<8x32xf32>
    %264 = vector.extract_strided_slice %23 {offsets = [32, 0], sizes = [8, 96], strides = [1, 1]} : vector<64x96xf32> to vector<8x96xf32>
    %cst_50 = arith.constant dense<0.000000e+00> : vector<8x96xf32>
    %265 = tpu.matmul %233, %2, %cst_50 {dimension_numbers = #tpu.dot_dimension_numbers<[1], [0], [0], [1], [0, 0, 1, 1], [], []>} : vector<8x32xf32>, vector<32x96xf32>, vector<8x96xf32> -> vector<8x96xf32>
    %266 = arith.addf %265, %10 : vector<8x96xf32>
    %267 = vector.extract_strided_slice %264 {offsets = [0, 0], sizes = [8, 32], strides = [1, 1]} : vector<8x96xf32> to vector<8x32xf32>
    %268 = vector.extract_strided_slice %266 {offsets = [0, 0], sizes = [8, 32], strides = [1, 1]} : vector<8x96xf32> to vector<8x32xf32>
    %269 = arith.addf %267, %268 : vector<8x32xf32>
    %270 = arith.negf %269 : vector<8x32xf32>
    %271 = math.exp %270 : vector<8x32xf32>
    %cst_51 = arith.constant 1.000000e+00 : f32
    %272 = vector.broadcast %cst_51 : f32 to vector<8x32xf32>
    %273 = arith.addf %272, %271 : vector<8x32xf32>
    %274 = arith.divf %272, %273 : vector<8x32xf32>
    %275 = vector.extract_strided_slice %264 {offsets = [0, 32], sizes = [8, 32], strides = [1, 1]} : vector<8x96xf32> to vector<8x32xf32>
    %276 = vector.extract_strided_slice %266 {offsets = [0, 32], sizes = [8, 32], strides = [1, 1]} : vector<8x96xf32> to vector<8x32xf32>
    %277 = arith.addf %275, %276 : vector<8x32xf32>
    %278 = arith.negf %277 : vector<8x32xf32>
    %279 = math.exp %278 : vector<8x32xf32>
    %cst_52 = arith.constant 1.000000e+00 : f32
    %280 = vector.broadcast %cst_52 : f32 to vector<8x32xf32>
    %281 = arith.addf %280, %279 : vector<8x32xf32>
    %282 = arith.divf %280, %281 : vector<8x32xf32>
    %283 = vector.extract_strided_slice %264 {offsets = [0, 64], sizes = [8, 32], strides = [1, 1]} : vector<8x96xf32> to vector<8x32xf32>
    %284 = vector.extract_strided_slice %266 {offsets = [0, 64], sizes = [8, 32], strides = [1, 1]} : vector<8x96xf32> to vector<8x32xf32>
    %285 = arith.mulf %274, %284 : vector<8x32xf32>
    %286 = arith.addf %283, %285 : vector<8x32xf32>
    %287 = math.tanh %286 : vector<8x32xf32>
    %cst_53 = arith.constant 1.000000e+00 : f32
    %288 = vector.broadcast %cst_53 : f32 to vector<8x32xf32>
    %289 = arith.subf %288, %282 : vector<8x32xf32>
    %290 = arith.mulf %289, %287 : vector<8x32xf32>
    %291 = arith.mulf %282, %233 : vector<8x32xf32>
    %292 = arith.addf %290, %291 : vector<8x32xf32>
    %cst_54 = arith.constant dense<0.000000e+00> : vector<8x96xf32>
    %293 = tpu.matmul %292, %4, %cst_54 {dimension_numbers = #tpu.dot_dimension_numbers<[1], [0], [0], [1], [0, 0, 1, 1], [], []>} : vector<8x32xf32>, vector<32x96xf32>, vector<8x96xf32> -> vector<8x96xf32>
    %294 = arith.addf %293, %13 : vector<8x96xf32>
    %cst_55 = arith.constant dense<0.000000e+00> : vector<8x96xf32>
    %295 = tpu.matmul %263, %5, %cst_55 {dimension_numbers = #tpu.dot_dimension_numbers<[1], [0], [0], [1], [0, 0, 1, 1], [], []>} : vector<8x32xf32>, vector<32x96xf32>, vector<8x96xf32> -> vector<8x96xf32>
    %296 = arith.addf %295, %16 : vector<8x96xf32>
    %297 = vector.extract_strided_slice %294 {offsets = [0, 0], sizes = [8, 32], strides = [1, 1]} : vector<8x96xf32> to vector<8x32xf32>
    %298 = vector.extract_strided_slice %296 {offsets = [0, 0], sizes = [8, 32], strides = [1, 1]} : vector<8x96xf32> to vector<8x32xf32>
    %299 = arith.addf %297, %298 : vector<8x32xf32>
    %300 = arith.negf %299 : vector<8x32xf32>
    %301 = math.exp %300 : vector<8x32xf32>
    %cst_56 = arith.constant 1.000000e+00 : f32
    %302 = vector.broadcast %cst_56 : f32 to vector<8x32xf32>
    %303 = arith.addf %302, %301 : vector<8x32xf32>
    %304 = arith.divf %302, %303 : vector<8x32xf32>
    %305 = vector.extract_strided_slice %294 {offsets = [0, 32], sizes = [8, 32], strides = [1, 1]} : vector<8x96xf32> to vector<8x32xf32>
    %306 = vector.extract_strided_slice %296 {offsets = [0, 32], sizes = [8, 32], strides = [1, 1]} : vector<8x96xf32> to vector<8x32xf32>
    %307 = arith.addf %305, %306 : vector<8x32xf32>
    %308 = arith.negf %307 : vector<8x32xf32>
    %309 = math.exp %308 : vector<8x32xf32>
    %cst_57 = arith.constant 1.000000e+00 : f32
    %310 = vector.broadcast %cst_57 : f32 to vector<8x32xf32>
    %311 = arith.addf %310, %309 : vector<8x32xf32>
    %312 = arith.divf %310, %311 : vector<8x32xf32>
    %313 = vector.extract_strided_slice %294 {offsets = [0, 64], sizes = [8, 32], strides = [1, 1]} : vector<8x96xf32> to vector<8x32xf32>
    %314 = vector.extract_strided_slice %296 {offsets = [0, 64], sizes = [8, 32], strides = [1, 1]} : vector<8x96xf32> to vector<8x32xf32>
    %315 = arith.mulf %304, %314 : vector<8x32xf32>
    %316 = arith.addf %313, %315 : vector<8x32xf32>
    %317 = math.tanh %316 : vector<8x32xf32>
    %cst_58 = arith.constant 1.000000e+00 : f32
    %318 = vector.broadcast %cst_58 : f32 to vector<8x32xf32>
    %319 = arith.subf %318, %312 : vector<8x32xf32>
    %320 = arith.mulf %319, %317 : vector<8x32xf32>
    %321 = arith.mulf %312, %263 : vector<8x32xf32>
    %322 = arith.addf %320, %321 : vector<8x32xf32>
    %323 = vector.extract_strided_slice %23 {offsets = [40, 0], sizes = [8, 96], strides = [1, 1]} : vector<64x96xf32> to vector<8x96xf32>
    %cst_59 = arith.constant dense<0.000000e+00> : vector<8x96xf32>
    %324 = tpu.matmul %292, %2, %cst_59 {dimension_numbers = #tpu.dot_dimension_numbers<[1], [0], [0], [1], [0, 0, 1, 1], [], []>} : vector<8x32xf32>, vector<32x96xf32>, vector<8x96xf32> -> vector<8x96xf32>
    %325 = arith.addf %324, %10 : vector<8x96xf32>
    %326 = vector.extract_strided_slice %323 {offsets = [0, 0], sizes = [8, 32], strides = [1, 1]} : vector<8x96xf32> to vector<8x32xf32>
    %327 = vector.extract_strided_slice %325 {offsets = [0, 0], sizes = [8, 32], strides = [1, 1]} : vector<8x96xf32> to vector<8x32xf32>
    %328 = arith.addf %326, %327 : vector<8x32xf32>
    %329 = arith.negf %328 : vector<8x32xf32>
    %330 = math.exp %329 : vector<8x32xf32>
    %cst_60 = arith.constant 1.000000e+00 : f32
    %331 = vector.broadcast %cst_60 : f32 to vector<8x32xf32>
    %332 = arith.addf %331, %330 : vector<8x32xf32>
    %333 = arith.divf %331, %332 : vector<8x32xf32>
    %334 = vector.extract_strided_slice %323 {offsets = [0, 32], sizes = [8, 32], strides = [1, 1]} : vector<8x96xf32> to vector<8x32xf32>
    %335 = vector.extract_strided_slice %325 {offsets = [0, 32], sizes = [8, 32], strides = [1, 1]} : vector<8x96xf32> to vector<8x32xf32>
    %336 = arith.addf %334, %335 : vector<8x32xf32>
    %337 = arith.negf %336 : vector<8x32xf32>
    %338 = math.exp %337 : vector<8x32xf32>
    %cst_61 = arith.constant 1.000000e+00 : f32
    %339 = vector.broadcast %cst_61 : f32 to vector<8x32xf32>
    %340 = arith.addf %339, %338 : vector<8x32xf32>
    %341 = arith.divf %339, %340 : vector<8x32xf32>
    %342 = vector.extract_strided_slice %323 {offsets = [0, 64], sizes = [8, 32], strides = [1, 1]} : vector<8x96xf32> to vector<8x32xf32>
    %343 = vector.extract_strided_slice %325 {offsets = [0, 64], sizes = [8, 32], strides = [1, 1]} : vector<8x96xf32> to vector<8x32xf32>
    %344 = arith.mulf %333, %343 : vector<8x32xf32>
    %345 = arith.addf %342, %344 : vector<8x32xf32>
    %346 = math.tanh %345 : vector<8x32xf32>
    %cst_62 = arith.constant 1.000000e+00 : f32
    %347 = vector.broadcast %cst_62 : f32 to vector<8x32xf32>
    %348 = arith.subf %347, %341 : vector<8x32xf32>
    %349 = arith.mulf %348, %346 : vector<8x32xf32>
    %350 = arith.mulf %341, %292 : vector<8x32xf32>
    %351 = arith.addf %349, %350 : vector<8x32xf32>
    %cst_63 = arith.constant dense<0.000000e+00> : vector<8x96xf32>
    %352 = tpu.matmul %351, %4, %cst_63 {dimension_numbers = #tpu.dot_dimension_numbers<[1], [0], [0], [1], [0, 0, 1, 1], [], []>} : vector<8x32xf32>, vector<32x96xf32>, vector<8x96xf32> -> vector<8x96xf32>
    %353 = arith.addf %352, %13 : vector<8x96xf32>
    %cst_64 = arith.constant dense<0.000000e+00> : vector<8x96xf32>
    %354 = tpu.matmul %322, %5, %cst_64 {dimension_numbers = #tpu.dot_dimension_numbers<[1], [0], [0], [1], [0, 0, 1, 1], [], []>} : vector<8x32xf32>, vector<32x96xf32>, vector<8x96xf32> -> vector<8x96xf32>
    %355 = arith.addf %354, %16 : vector<8x96xf32>
    %356 = vector.extract_strided_slice %353 {offsets = [0, 0], sizes = [8, 32], strides = [1, 1]} : vector<8x96xf32> to vector<8x32xf32>
    %357 = vector.extract_strided_slice %355 {offsets = [0, 0], sizes = [8, 32], strides = [1, 1]} : vector<8x96xf32> to vector<8x32xf32>
    %358 = arith.addf %356, %357 : vector<8x32xf32>
    %359 = arith.negf %358 : vector<8x32xf32>
    %360 = math.exp %359 : vector<8x32xf32>
    %cst_65 = arith.constant 1.000000e+00 : f32
    %361 = vector.broadcast %cst_65 : f32 to vector<8x32xf32>
    %362 = arith.addf %361, %360 : vector<8x32xf32>
    %363 = arith.divf %361, %362 : vector<8x32xf32>
    %364 = vector.extract_strided_slice %353 {offsets = [0, 32], sizes = [8, 32], strides = [1, 1]} : vector<8x96xf32> to vector<8x32xf32>
    %365 = vector.extract_strided_slice %355 {offsets = [0, 32], sizes = [8, 32], strides = [1, 1]} : vector<8x96xf32> to vector<8x32xf32>
    %366 = arith.addf %364, %365 : vector<8x32xf32>
    %367 = arith.negf %366 : vector<8x32xf32>
    %368 = math.exp %367 : vector<8x32xf32>
    %cst_66 = arith.constant 1.000000e+00 : f32
    %369 = vector.broadcast %cst_66 : f32 to vector<8x32xf32>
    %370 = arith.addf %369, %368 : vector<8x32xf32>
    %371 = arith.divf %369, %370 : vector<8x32xf32>
    %372 = vector.extract_strided_slice %353 {offsets = [0, 64], sizes = [8, 32], strides = [1, 1]} : vector<8x96xf32> to vector<8x32xf32>
    %373 = vector.extract_strided_slice %355 {offsets = [0, 64], sizes = [8, 32], strides = [1, 1]} : vector<8x96xf32> to vector<8x32xf32>
    %374 = arith.mulf %363, %373 : vector<8x32xf32>
    %375 = arith.addf %372, %374 : vector<8x32xf32>
    %376 = math.tanh %375 : vector<8x32xf32>
    %cst_67 = arith.constant 1.000000e+00 : f32
    %377 = vector.broadcast %cst_67 : f32 to vector<8x32xf32>
    %378 = arith.subf %377, %371 : vector<8x32xf32>
    %379 = arith.mulf %378, %376 : vector<8x32xf32>
    %380 = arith.mulf %371, %322 : vector<8x32xf32>
    %381 = arith.addf %379, %380 : vector<8x32xf32>
    %382 = vector.extract_strided_slice %23 {offsets = [48, 0], sizes = [8, 96], strides = [1, 1]} : vector<64x96xf32> to vector<8x96xf32>
    %cst_68 = arith.constant dense<0.000000e+00> : vector<8x96xf32>
    %383 = tpu.matmul %351, %2, %cst_68 {dimension_numbers = #tpu.dot_dimension_numbers<[1], [0], [0], [1], [0, 0, 1, 1], [], []>} : vector<8x32xf32>, vector<32x96xf32>, vector<8x96xf32> -> vector<8x96xf32>
    %384 = arith.addf %383, %10 : vector<8x96xf32>
    %385 = vector.extract_strided_slice %382 {offsets = [0, 0], sizes = [8, 32], strides = [1, 1]} : vector<8x96xf32> to vector<8x32xf32>
    %386 = vector.extract_strided_slice %384 {offsets = [0, 0], sizes = [8, 32], strides = [1, 1]} : vector<8x96xf32> to vector<8x32xf32>
    %387 = arith.addf %385, %386 : vector<8x32xf32>
    %388 = arith.negf %387 : vector<8x32xf32>
    %389 = math.exp %388 : vector<8x32xf32>
    %cst_69 = arith.constant 1.000000e+00 : f32
    %390 = vector.broadcast %cst_69 : f32 to vector<8x32xf32>
    %391 = arith.addf %390, %389 : vector<8x32xf32>
    %392 = arith.divf %390, %391 : vector<8x32xf32>
    %393 = vector.extract_strided_slice %382 {offsets = [0, 32], sizes = [8, 32], strides = [1, 1]} : vector<8x96xf32> to vector<8x32xf32>
    %394 = vector.extract_strided_slice %384 {offsets = [0, 32], sizes = [8, 32], strides = [1, 1]} : vector<8x96xf32> to vector<8x32xf32>
    %395 = arith.addf %393, %394 : vector<8x32xf32>
    %396 = arith.negf %395 : vector<8x32xf32>
    %397 = math.exp %396 : vector<8x32xf32>
    %cst_70 = arith.constant 1.000000e+00 : f32
    %398 = vector.broadcast %cst_70 : f32 to vector<8x32xf32>
    %399 = arith.addf %398, %397 : vector<8x32xf32>
    %400 = arith.divf %398, %399 : vector<8x32xf32>
    %401 = vector.extract_strided_slice %382 {offsets = [0, 64], sizes = [8, 32], strides = [1, 1]} : vector<8x96xf32> to vector<8x32xf32>
    %402 = vector.extract_strided_slice %384 {offsets = [0, 64], sizes = [8, 32], strides = [1, 1]} : vector<8x96xf32> to vector<8x32xf32>
    %403 = arith.mulf %392, %402 : vector<8x32xf32>
    %404 = arith.addf %401, %403 : vector<8x32xf32>
    %405 = math.tanh %404 : vector<8x32xf32>
    %cst_71 = arith.constant 1.000000e+00 : f32
    %406 = vector.broadcast %cst_71 : f32 to vector<8x32xf32>
    %407 = arith.subf %406, %400 : vector<8x32xf32>
    %408 = arith.mulf %407, %405 : vector<8x32xf32>
    %409 = arith.mulf %400, %351 : vector<8x32xf32>
    %410 = arith.addf %408, %409 : vector<8x32xf32>
    %cst_72 = arith.constant dense<0.000000e+00> : vector<8x96xf32>
    %411 = tpu.matmul %410, %4, %cst_72 {dimension_numbers = #tpu.dot_dimension_numbers<[1], [0], [0], [1], [0, 0, 1, 1], [], []>} : vector<8x32xf32>, vector<32x96xf32>, vector<8x96xf32> -> vector<8x96xf32>
    %412 = arith.addf %411, %13 : vector<8x96xf32>
    %cst_73 = arith.constant dense<0.000000e+00> : vector<8x96xf32>
    %413 = tpu.matmul %381, %5, %cst_73 {dimension_numbers = #tpu.dot_dimension_numbers<[1], [0], [0], [1], [0, 0, 1, 1], [], []>} : vector<8x32xf32>, vector<32x96xf32>, vector<8x96xf32> -> vector<8x96xf32>
    %414 = arith.addf %413, %16 : vector<8x96xf32>
    %415 = vector.extract_strided_slice %412 {offsets = [0, 0], sizes = [8, 32], strides = [1, 1]} : vector<8x96xf32> to vector<8x32xf32>
    %416 = vector.extract_strided_slice %414 {offsets = [0, 0], sizes = [8, 32], strides = [1, 1]} : vector<8x96xf32> to vector<8x32xf32>
    %417 = arith.addf %415, %416 : vector<8x32xf32>
    %418 = arith.negf %417 : vector<8x32xf32>
    %419 = math.exp %418 : vector<8x32xf32>
    %cst_74 = arith.constant 1.000000e+00 : f32
    %420 = vector.broadcast %cst_74 : f32 to vector<8x32xf32>
    %421 = arith.addf %420, %419 : vector<8x32xf32>
    %422 = arith.divf %420, %421 : vector<8x32xf32>
    %423 = vector.extract_strided_slice %412 {offsets = [0, 32], sizes = [8, 32], strides = [1, 1]} : vector<8x96xf32> to vector<8x32xf32>
    %424 = vector.extract_strided_slice %414 {offsets = [0, 32], sizes = [8, 32], strides = [1, 1]} : vector<8x96xf32> to vector<8x32xf32>
    %425 = arith.addf %423, %424 : vector<8x32xf32>
    %426 = arith.negf %425 : vector<8x32xf32>
    %427 = math.exp %426 : vector<8x32xf32>
    %cst_75 = arith.constant 1.000000e+00 : f32
    %428 = vector.broadcast %cst_75 : f32 to vector<8x32xf32>
    %429 = arith.addf %428, %427 : vector<8x32xf32>
    %430 = arith.divf %428, %429 : vector<8x32xf32>
    %431 = vector.extract_strided_slice %412 {offsets = [0, 64], sizes = [8, 32], strides = [1, 1]} : vector<8x96xf32> to vector<8x32xf32>
    %432 = vector.extract_strided_slice %414 {offsets = [0, 64], sizes = [8, 32], strides = [1, 1]} : vector<8x96xf32> to vector<8x32xf32>
    %433 = arith.mulf %422, %432 : vector<8x32xf32>
    %434 = arith.addf %431, %433 : vector<8x32xf32>
    %435 = math.tanh %434 : vector<8x32xf32>
    %cst_76 = arith.constant 1.000000e+00 : f32
    %436 = vector.broadcast %cst_76 : f32 to vector<8x32xf32>
    %437 = arith.subf %436, %430 : vector<8x32xf32>
    %438 = arith.mulf %437, %435 : vector<8x32xf32>
    %439 = arith.mulf %430, %381 : vector<8x32xf32>
    %440 = arith.addf %438, %439 : vector<8x32xf32>
    %441 = vector.extract_strided_slice %23 {offsets = [56, 0], sizes = [8, 96], strides = [1, 1]} : vector<64x96xf32> to vector<8x96xf32>
    %cst_77 = arith.constant dense<0.000000e+00> : vector<8x96xf32>
    %442 = tpu.matmul %410, %2, %cst_77 {dimension_numbers = #tpu.dot_dimension_numbers<[1], [0], [0], [1], [0, 0, 1, 1], [], []>} : vector<8x32xf32>, vector<32x96xf32>, vector<8x96xf32> -> vector<8x96xf32>
    %443 = arith.addf %442, %10 : vector<8x96xf32>
    %444 = vector.extract_strided_slice %441 {offsets = [0, 0], sizes = [8, 32], strides = [1, 1]} : vector<8x96xf32> to vector<8x32xf32>
    %445 = vector.extract_strided_slice %443 {offsets = [0, 0], sizes = [8, 32], strides = [1, 1]} : vector<8x96xf32> to vector<8x32xf32>
    %446 = arith.addf %444, %445 : vector<8x32xf32>
    %447 = arith.negf %446 : vector<8x32xf32>
    %448 = math.exp %447 : vector<8x32xf32>
    %cst_78 = arith.constant 1.000000e+00 : f32
    %449 = vector.broadcast %cst_78 : f32 to vector<8x32xf32>
    %450 = arith.addf %449, %448 : vector<8x32xf32>
    %451 = arith.divf %449, %450 : vector<8x32xf32>
    %452 = vector.extract_strided_slice %441 {offsets = [0, 32], sizes = [8, 32], strides = [1, 1]} : vector<8x96xf32> to vector<8x32xf32>
    %453 = vector.extract_strided_slice %443 {offsets = [0, 32], sizes = [8, 32], strides = [1, 1]} : vector<8x96xf32> to vector<8x32xf32>
    %454 = arith.addf %452, %453 : vector<8x32xf32>
    %455 = arith.negf %454 : vector<8x32xf32>
    %456 = math.exp %455 : vector<8x32xf32>
    %cst_79 = arith.constant 1.000000e+00 : f32
    %457 = vector.broadcast %cst_79 : f32 to vector<8x32xf32>
    %458 = arith.addf %457, %456 : vector<8x32xf32>
    %459 = arith.divf %457, %458 : vector<8x32xf32>
    %460 = vector.extract_strided_slice %441 {offsets = [0, 64], sizes = [8, 32], strides = [1, 1]} : vector<8x96xf32> to vector<8x32xf32>
    %461 = vector.extract_strided_slice %443 {offsets = [0, 64], sizes = [8, 32], strides = [1, 1]} : vector<8x96xf32> to vector<8x32xf32>
    %462 = arith.mulf %451, %461 : vector<8x32xf32>
    %463 = arith.addf %460, %462 : vector<8x32xf32>
    %464 = math.tanh %463 : vector<8x32xf32>
    %cst_80 = arith.constant 1.000000e+00 : f32
    %465 = vector.broadcast %cst_80 : f32 to vector<8x32xf32>
    %466 = arith.subf %465, %459 : vector<8x32xf32>
    %467 = arith.mulf %466, %464 : vector<8x32xf32>
    %468 = arith.mulf %459, %410 : vector<8x32xf32>
    %469 = arith.addf %467, %468 : vector<8x32xf32>
    %cst_81 = arith.constant dense<0.000000e+00> : vector<8x96xf32>
    %470 = tpu.matmul %469, %4, %cst_81 {dimension_numbers = #tpu.dot_dimension_numbers<[1], [0], [0], [1], [0, 0, 1, 1], [], []>} : vector<8x32xf32>, vector<32x96xf32>, vector<8x96xf32> -> vector<8x96xf32>
    %471 = arith.addf %470, %13 : vector<8x96xf32>
    %cst_82 = arith.constant dense<0.000000e+00> : vector<8x96xf32>
    %472 = tpu.matmul %440, %5, %cst_82 {dimension_numbers = #tpu.dot_dimension_numbers<[1], [0], [0], [1], [0, 0, 1, 1], [], []>} : vector<8x32xf32>, vector<32x96xf32>, vector<8x96xf32> -> vector<8x96xf32>
    %473 = arith.addf %472, %16 : vector<8x96xf32>
    %474 = vector.extract_strided_slice %471 {offsets = [0, 0], sizes = [8, 32], strides = [1, 1]} : vector<8x96xf32> to vector<8x32xf32>
    %475 = vector.extract_strided_slice %473 {offsets = [0, 0], sizes = [8, 32], strides = [1, 1]} : vector<8x96xf32> to vector<8x32xf32>
    %476 = arith.addf %474, %475 : vector<8x32xf32>
    %477 = arith.negf %476 : vector<8x32xf32>
    %478 = math.exp %477 : vector<8x32xf32>
    %cst_83 = arith.constant 1.000000e+00 : f32
    %479 = vector.broadcast %cst_83 : f32 to vector<8x32xf32>
    %480 = arith.addf %479, %478 : vector<8x32xf32>
    %481 = arith.divf %479, %480 : vector<8x32xf32>
    %482 = vector.extract_strided_slice %471 {offsets = [0, 32], sizes = [8, 32], strides = [1, 1]} : vector<8x96xf32> to vector<8x32xf32>
    %483 = vector.extract_strided_slice %473 {offsets = [0, 32], sizes = [8, 32], strides = [1, 1]} : vector<8x96xf32> to vector<8x32xf32>
    %484 = arith.addf %482, %483 : vector<8x32xf32>
    %485 = arith.negf %484 : vector<8x32xf32>
    %486 = math.exp %485 : vector<8x32xf32>
    %cst_84 = arith.constant 1.000000e+00 : f32
    %487 = vector.broadcast %cst_84 : f32 to vector<8x32xf32>
    %488 = arith.addf %487, %486 : vector<8x32xf32>
    %489 = arith.divf %487, %488 : vector<8x32xf32>
    %490 = vector.extract_strided_slice %471 {offsets = [0, 64], sizes = [8, 32], strides = [1, 1]} : vector<8x96xf32> to vector<8x32xf32>
    %491 = vector.extract_strided_slice %473 {offsets = [0, 64], sizes = [8, 32], strides = [1, 1]} : vector<8x96xf32> to vector<8x32xf32>
    %492 = arith.mulf %481, %491 : vector<8x32xf32>
    %493 = arith.addf %490, %492 : vector<8x32xf32>
    %494 = math.tanh %493 : vector<8x32xf32>
    %cst_85 = arith.constant 1.000000e+00 : f32
    %495 = vector.broadcast %cst_85 : f32 to vector<8x32xf32>
    %496 = arith.subf %495, %489 : vector<8x32xf32>
    %497 = arith.mulf %496, %494 : vector<8x32xf32>
    %498 = arith.mulf %489, %440 : vector<8x32xf32>
    %499 = arith.addf %497, %498 : vector<8x32xf32>
    %c0_86 = arith.constant 0 : index
    %c0_87 = arith.constant 0 : index
    %c0_88 = arith.constant 0 : index
    %500 = vector.load %arg7[%c0_86, %c0_87, %c0_88] : memref<2x8x32xf32, #tpu.memory_space<vmem>>, vector<1x8x32xf32>
    %501 = vector.shape_cast %500 : vector<1x8x32xf32> to vector<8x32xf32>
    %502 = vector.shape_cast %469 : vector<8x32xf32> to vector<1x8x32xf32>
    tpu.vector_store %arg7[%c0_86, %c0_87, %c0_88], %502 {strides = array<i32>} : memref<2x8x32xf32, #tpu.memory_space<vmem>>, vector<1x8x32xf32>,
    %c1_89 = arith.constant 1 : index
    %c0_90 = arith.constant 0 : index
    %c0_91 = arith.constant 0 : index
    %503 = vector.load %arg7[%c1_89, %c0_90, %c0_91] : memref<2x8x32xf32, #tpu.memory_space<vmem>>, vector<1x8x32xf32>
    %504 = vector.shape_cast %503 : vector<1x8x32xf32> to vector<8x32xf32>
    %505 = vector.shape_cast %499 : vector<8x32xf32> to vector<1x8x32xf32>
    tpu.vector_store %arg7[%c1_89, %c0_90, %c0_91], %505 {strides = array<i32>} : memref<2x8x32xf32, #tpu.memory_space<vmem>>, vector<1x8x32xf32>,
    %cst_92 = arith.constant dense<0.000000e+00> : vector<8x4xf32>
    %506 = tpu.matmul %499, %18, %cst_92 {dimension_numbers = #tpu.dot_dimension_numbers<[1], [0], [0], [1], [0, 0, 1, 1], [], []>} : vector<8x32xf32>, vector<32x4xf32>, vector<8x4xf32> -> vector<8x4xf32>
    %507 = vector.broadcast %19 : vector<1x4xf32> to vector<8x4xf32>
    %508 = arith.addf %506, %507 : vector<8x4xf32>
    %c0_93 = arith.constant 0 : index
    %c0_94 = arith.constant 0 : index
    %509 = vector.load %arg6[%c0_93, %c0_94] : memref<8x4xf32, #tpu.memory_space<vmem>>, vector<8x4xf32>
    tpu.vector_store %arg6[%c0_93, %c0_94], %508 {strides = array<i32>} : memref<8x4xf32, #tpu.memory_space<vmem>>, vector<8x4xf32>,
    return
  }
}

</mosaic_0001>

<llo_original>
// kernel: tpu_custom_call.1
$region0: #{tpu_custom_call.1}
  #allocation0 [shape = 'u32[]', space=smem, size = 0x4, offset = 0x4, fixed_abs, tag = 'smem constant byte address 0x4 - core index']
  #allocation1 [shape = 'u32[72,128]{1,0:T(1,128)}', space=vmem, size = 0x9000, scoped, tag = 'internal scratch']
  %s0 = inlined_call_operand.vmem [shape: f32[64,8], index: 0, kind: input, shape index: {}]
  %s1 = inlined_call_operand.hbm [shape: f32[2,8,32], index: 1, kind: input, shape index: {}]
  %s2 = inlined_call_operand.vmem [shape: f32[40,96], index: 2, kind: input, shape index: {}]
  %s3 = inlined_call_operand.vmem [shape: f32[64,96], index: 3, kind: input, shape index: {}]
  %s4 = inlined_call_operand.vmem [shape: f32[4,96], index: 4, kind: input, shape index: {}]
  %s5 = inlined_call_operand.vmem [shape: f32[33,4], index: 5, kind: input, shape index: {}]
  %s6 = inlined_call_operand.vmem [shape: f32[8,4], index: 6, kind: output, shape index: {0}]
  %s7 = inlined_call_operand.hbm [shape: f32[2,8,32], index: 7, kind: output, shape index: {1}]
  %8 = xla_tuple %s6, %s7
  %s9 = sld [smem:[#allocation0]]
  $region46: #{tpu_custom_call.1} parent=0
    _
  %s11 = ssub.s32 1, %s9
  %s12 = scalar_select 0, %s11, %s9
  $region1: #{tpu_custom_call.1} parent=0
    #allocation2 [shape = 'u8[8192]{0}', space=vmem, size = 0x2000, scoped, tag = 'input window, operand 1, single buffered']
    #allocation3 [shape = 's32[1]{0}', space=sflag, size = 0x4, scoped, tag = 'scoped memory for tpu_custom_call.1']
    #allocation4 [shape = 's32[1]{0}', space=sflag, size = 0x4, scoped, tag = 'scoped memory for tpu_custom_call.1']
    #allocation5 [shape = 'u8[8192]{0}', space=vmem, size = 0x2000, scoped, tag = 'output window, operand 1, single buffered']
    %13 = vsyncpa [#allocation3], 0
    %14 = vsyncpa [#allocation4], 0
    // Predicated region
    $region2: #{tpu_custom_call.1} parent=1 // pred_check
      _
    $region3: #{tpu_custom_call.1} parent=1 // pred_check_branch
      %16 = sbr.rel (0) target = $region5
    $region4: #{tpu_custom_call.1} parent=1 // pred_region
      _
    $region5: #{tpu_custom_call.1} parent=1 // pred_fallthru
      _
    // Predicated region
    $region6: #{tpu_custom_call.1} parent=1 // pred_check
      _
    $region7: #{tpu_custom_call.1} parent=1 // pred_check_branch
      %18 = sbr.rel (0) target = $region9
    $region8: #{tpu_custom_call.1} parent=1 // pred_region
      %20 = vsyncadd [#allocation3], 0
      %s21 = sshll.u32 %s1, 4
      %s22 = int_to_ptr.hbm [resolvable:$true] %s21
      %s23 = sshll.u32 [#allocation2], 4
      %s24 = int_to_ptr.vmem [resolvable:$true] %s23
      %29 = dma.hbm_to_vmem [thread:$0]  %s22, 256, %s24, [#allocation3], 128, 128, 8
    $region9: #{tpu_custom_call.1} parent=1 // pred_fallthru
      _
    // Predicated region
    $region10: #{tpu_custom_call.1} parent=1 // pred_check
      _
    $region11: #{tpu_custom_call.1} parent=1 // pred_check_branch
      %31 = sbr.rel (0) target = $region13
    $region12: #{tpu_custom_call.1} parent=1 // pred_region
      _
    $region13: #{tpu_custom_call.1} parent=1 // pred_fallthru
      _
    // Predicated region
    $region14: #{tpu_custom_call.1} parent=1 // pred_check
      _
    $region15: #{tpu_custom_call.1} parent=1 // pred_check_branch
      %33 = sbr.rel (0) target = $region17
    $region16: #{tpu_custom_call.1} parent=1 // pred_region
      _
    $region17: #{tpu_custom_call.1} parent=1 // pred_fallthru
      _
    // Predicated region
    $region18: #{tpu_custom_call.1} parent=1 // pred_check
      _
    $region19: #{tpu_custom_call.1} parent=1 // pred_check_branch
      %35 = sbr.rel (0) target = $region21
    $region20: #{tpu_custom_call.1} parent=1 // pred_region
      _
    $region21: #{tpu_custom_call.1} parent=1 // pred_fallthru
      _
    // Predicated region
    $region22: #{tpu_custom_call.1} parent=1 // pred_check
      _
    $region23: #{tpu_custom_call.1} parent=1 // pred_check_branch
      %37 = sbr.rel (0) target = $region25
    $region24: #{tpu_custom_call.1} parent=1 // pred_region
      _
    $region25: #{tpu_custom_call.1} parent=1 // pred_fallthru
      _
    // Predicated region
    $region26: #{tpu_custom_call.1} parent=1 // pred_check
      _
    $region27: #{tpu_custom_call.1} parent=1 // pred_check_branch
      %39 = sbr.rel (0) target = $region29
    $region28: #{tpu_custom_call.1} parent=1 // pred_region
      %41 = dma.done [#allocation3], 256
    $region29: #{tpu_custom_call.1} parent=1 // pred_fallthru
      _
    %v42 = vld [vmem:[%s2] sm:$0xff]
    %v43 = vld [vmem:[%s2 + $0x8] sm:$0xff]
    %v44 = vld [vmem:[%s2 + $0x10] sm:$0xff]
    %v45 = vld [vmem:[%s2 + $0x18] sm:$0xff]
    %v46 = vld [vmem:[%s2 + $0x20] sm:$0xff]
    %v47 = vld [vmem:[%s3] sm:$0xff]
    %v48 = vld [vmem:[%s3 + $0x8] sm:$0xff]
    %v49 = vld [vmem:[%s3 + $0x10] sm:$0xff]
    %v50 = vld [vmem:[%s3 + $0x18] sm:$0xff]
    %v51 = vld [vmem:[%s3 + $0x20] sm:$0xff]
    %v52 = vld [vmem:[%s3 + $0x28] sm:$0xff]
    %v53 = vld [vmem:[%s3 + $0x30] sm:$0xff]
    %v54 = vld [vmem:[%s3 + $0x38] sm:$0xff]
    %v55 = vld [vmem:[%s4] sm:$0xf]
    %v56 = vperm.slane %v55, 1
    %v57 = vperm.slane %v55, 2
    %v58 = vperm.slane %v55, 3
    %v59 = vld [vmem:[%s5] sm:$0xff]
    %v60 = vld [vmem:[%s5 + $0x8] sm:$0xff]
    %v61 = vld [vmem:[%s5 + $0x10] sm:$0xff]
    %v62 = vld [vmem:[%s5 + $0x18] sm:$0xff]
    %v63 = vld [vmem:[%s5 + $0x20] sm:$0x1]
    %v64 = vld [vmem:[%s0] sm:$0xff]
    %v65 = vld [vmem:[%s0 + $0x8] sm:$0xff]
    %v66 = vld [vmem:[%s0 + $0x10] sm:$0xff]
    %v67 = vld [vmem:[%s0 + $0x18] sm:$0xff]
    %v68 = vld [vmem:[%s0 + $0x20] sm:$0xff]
    %v69 = vld [vmem:[%s0 + $0x28] sm:$0xff]
    %v70 = vld [vmem:[%s0 + $0x30] sm:$0xff]
    %v71 = vld [vmem:[%s0 + $0x38] sm:$0xff]
    %v72 = vperm.slane %v55, 0
    %vm73 = vcmask 64512
    %v75 = vsel %vm73, %v64, 0
    %v78 = vsel %vm73, %v65, 0
    %v81 = vsel %vm73, %v66, 0
    %v84 = vsel %vm73, %v67, 0
    %v87 = vsel %vm73, %v68, 0
    %v90 = vsel %vm73, %v69, 0
    %v93 = vsel %vm73, %v70, 0
    %v96 = vsel %vm73, %v71, 0
    %98 = vmatpush.msra.mxu0 0.0
    %99 = vmatpush.msra.mxu0 0.0
    %100 = vmatpush.msra.mxu0 0.0
    %101 = vmatpush.msra.mxu0 0.0
    %102 = vmatpush.msra.mxu0 0.0
    %103 = vmatpush.msra.mxu0 0.0
    %104 = vmatpush.msra.mxu0 0.0
    %105 = vmatpush.msra.mxu0 0.0
    %106 = vmatpush.msra.mxu0 0.0
    %107 = vmatpush.msra.mxu0 0.0
    %108 = vmatpush.msra.mxu0 0.0
    %109 = vmatpush.msra.mxu0 0.0
    %110 = vmatpush.msra.mxu0 0.0
    %111 = vmatpush.msra.mxu0 0.0
    %112 = vmatpush.msra.mxu0 0.0
    %113 = vmatpush.msra.mxu0 %v42
    %114 = vmatmul.f32.gmra.mxu0 %v75
    %v115 = vpop.f32.mrf.mxu0
    %v116 = vadd.f32 %v72, %v115
    %117 = vmatmul.f32.gmra.mxu0 %v78
    %v118 = vpop.f32.mrf.mxu0
    %v119 = vadd.f32 %v72, %v118
    %120 = vmatmul.f32.gmra.mxu0 %v81
    %v121 = vpop.f32.mrf.mxu0
    %v122 = vadd.f32 %v72, %v121
    %123 = vmatmul.f32.gmra.mxu0 %v84
    %v124 = vpop.f32.mrf.mxu0
    %v125 = vadd.f32 %v72, %v124
    %126 = vmatmul.f32.gmra.mxu0 %v87
    %v127 = vpop.f32.mrf.mxu0
    %v128 = vadd.f32 %v72, %v127
    %129 = vmatmul.f32.gmra.mxu0 %v90
    %v130 = vpop.f32.mrf.mxu0
    %v131 = vadd.f32 %v72, %v130
    %132 = vmatmul.f32.gmra.mxu0 %v93
    %v133 = vpop.f32.mrf.mxu0
    %v134 = vadd.f32 %v72, %v133
    %135 = vmatmul.f32.gmra.mxu0 %v96
    %v136 = vpop.f32.mrf.mxu0
    %v137 = vadd.f32 %v72, %v136
    %138 = vdwg.mxu0
    %v139 = vld [vmem:[#allocation2] sm:$0xff]
    %s140 = scalar_lea.vmem [#allocation2], 8
    %v141 = vld [vmem:[%s140] sm:$0xff]
    %vm142 = vcmask 261120
    %v144 = vsel %vm142, %v139, 0
    %146 = vmatpush.msra.mxu0 0.0
    %147 = vmatpush.msra.mxu0 0.0
    %148 = vmatpush.msra.mxu0 0.0
    %149 = vmatpush.msra.mxu0 0.0
    %150 = vmatpush.msra.mxu0 0.0
    %151 = vmatpush.msra.mxu0 0.0
    %152 = vmatpush.msra.mxu0 0.0
    %153 = vmatpush.msra.mxu0 0.0
    %154 = vmatpush.msra.mxu0 0.0
    %155 = vmatpush.msra.mxu0 0.0
    %156 = vmatpush.msra.mxu0 0.0
    %157 = vmatpush.msra.mxu0 0.0
    %158 = vmatpush.msra.mxu0 %v46
    %159 = vmatpush.msra.mxu0 %v45
    %160 = vmatpush.msra.mxu0 %v44
    %161 = vmatpush.msra.mxu0 %v43
    %162 = vmatmul.f32.gmra.mxu0 %v144
    %v163 = vpop.f32.mrf.mxu0
    %v164 = vadd.f32 %v56, %v163
    %165 = vdwg.mxu0
    %v166 = vadd.f32 %v116, %v164
    %v167 = vxor.u32 %v166, 2147483648
    %v168 = vmul.f32 %v167, 1.442695
    %v169 = vpow.pop %v168
    %v170 = vadd.f32 %v169, 1.0
    %v171 = vrcp.pop %v170
    %v172 = vmul.f32 %v170, %v171
    %v173 = vsub.f32 1.0, %v172
    %v174 = vmul.f32 %v171, %v173
    %v175 = vadd.f32 %v171, %v174
    %vm176 = vweird.f32 %v170
    %vm177 = vweird.f32 %v171
    %vm178 = vmor %vm176, %vm177
    %v179 = vsel %vm178, %v171, %v175
    %v180 = vand.u32 2147483647, %v170
    %vm181 = vcmp.eq.f32.partialorder %v180, 8.507059e+37
    %v182 = vand.u32 %v170, 2147483648
    %v183 = vor.u32 1.1754944e-38, %v182
    %v184 = vsel %vm181, %v183, %v179
    %v185 = vmul.f32 1.0, %v184
    %187 = vrot.lane.b32.xlu0 %v164, 64
    %v188 = vpop.permute.xlu0 %187
    %v190 = vmul.f32 %v185, %v188
    %192 = vrot.lane.b32.xlu0 %v190, 64
    %v193 = vpop.permute.xlu0 %192
    %v195 = vadd.f32 %v116, %v193
    %v196 = vtanh.pop %v195
    %v197 = vsub.f32 1.0, %v185
    %199 = vrot.lane.b32.xlu0 %v196, 96
    %v200 = vpop.permute.xlu0 %199
    %v202 = vmul.f32 %v197, %v200
    %203 = vrot.lane.b32.xlu0 %v139, 32
    %v204 = vpop.permute.xlu0 %203
    %v206 = vmul.f32 %v185, %v204
    %v207 = vadd.f32 %v202, %v206
    %209 = vrot.lane.b32.xlu0 %v207, 96
    %v210 = vpop.permute.xlu0 %209
    %v211 = vsel %vm142, %v210, 0
    %213 = vmatpush.msra.mxu0 0.0
    %214 = vmatpush.msra.mxu0 0.0
    %215 = vmatpush.msra.mxu0 0.0
    %216 = vmatpush.msra.mxu0 0.0
    %217 = vmatpush.msra.mxu0 0.0
    %218 = vmatpush.msra.mxu0 0.0
    %219 = vmatpush.msra.mxu0 0.0
    %220 = vmatpush.msra.mxu0 0.0
    %221 = vmatpush.msra.mxu0 0.0
    %222 = vmatpush.msra.mxu0 0.0
    %223 = vmatpush.msra.mxu0 0.0
    %224 = vmatpush.msra.mxu0 0.0
    %225 = vmatpush.msra.mxu0 %v50
    %226 = vmatpush.msra.mxu0 %v49
    %227 = vmatpush.msra.mxu0 %v48
    %228 = vmatpush.msra.mxu0 %v47
    %229 = vmatmul.f32.gmra.mxu0 %v211
    %v230 = vpop.f32.mrf.mxu0
    %v231 = vadd.f32 %v57, %v230
    %232 = vdwg.mxu0
    %v234 = vsel %vm142, %v141, 0
    %236 = vmatpush.msra.mxu0 0.0
    %237 = vmatpush.msra.mxu0 0.0
    %238 = vmatpush.msra.mxu0 0.0
    %239 = vmatpush.msra.mxu0 0.0
    %240 = vmatpush.msra.mxu0 0.0
    %241 = vmatpush.msra.mxu0 0.0
    %242 = vmatpush.msra.mxu0 0.0
    %243 = vmatpush.msra.mxu0 0.0
    %244 = vmatpush.msra.mxu0 0.0
    %245 = vmatpush.msra.mxu0 0.0
    %246 = vmatpush.msra.mxu0 0.0
    %247 = vmatpush.msra.mxu0 0.0
    %248 = vmatpush.msra.mxu0 %v54
    %249 = vmatpush.msra.mxu0 %v53
    %250 = vmatpush.msra.mxu0 %v52
    %251 = vmatpush.msra.mxu0 %v51
    %252 = vmatmul.f32.gmra.mxu0 %v234
    %v253 = vpop.f32.mrf.mxu0
    %v254 = vadd.f32 %v58, %v253
    %255 = vdwg.mxu0
    %v256 = vadd.f32 %v231, %v254
    %v257 = vxor.u32 %v256, 2147483648
    %v258 = vmul.f32 %v257, 1.442695
    %v259 = vpow.pop %v258
    %v260 = vadd.f32 %v259, 1.0
    %v261 = vrcp.pop %v260
    %v262 = vmul.f32 %v260, %v261
    %v263 = vsub.f32 1.0, %v262
    %v264 = vmul.f32 %v261, %v263
    %v265 = vadd.f32 %v261, %v264
    %vm266 = vweird.f32 %v260
    %vm267 = vweird.f32 %v261
    %vm268 = vmor %vm266, %vm267
    %v269 = vsel %vm268, %v261, %v265
    %v270 = vand.u32 2147483647, %v260
    %vm271 = vcmp.eq.f32.partialorder %v270, 8.507059e+37
    %v272 = vand.u32 %v260, 2147483648
    %v273 = vor.u32 1.1754944e-38, %v272
    %v274 = vsel %vm271, %v273, %v269
    %v275 = vmul.f32 1.0, %v274
    %277 = vrot.lane.b32.xlu0 %v254, 64
    %v278 = vpop.permute.xlu0 %277
    %v280 = vmul.f32 %v275, %v278
    %282 = vrot.lane.b32.xlu0 %v280, 64
    %v283 = vpop.permute.xlu0 %282
    %v285 = vadd.f32 %v231, %v283
    %v286 = vtanh.pop %v285
    %v287 = vsub.f32 1.0, %v275
    %289 = vrot.lane.b32.xlu0 %v286, 96
    %v290 = vpop.permute.xlu0 %289
    %v292 = vmul.f32 %v287, %v290
    %293 = vrot.lane.b32.xlu0 %v141, 32
    %v294 = vpop.permute.xlu0 %293
    %v296 = vmul.f32 %v275, %v294
    %v297 = vadd.f32 %v292, %v296
    %298 = vmatpush.msra.mxu0 0.0
    %299 = vmatpush.msra.mxu0 0.0
    %300 = vmatpush.msra.mxu0 0.0
    %301 = vmatpush.msra.mxu0 0.0
    %302 = vmatpush.msra.mxu0 0.0
    %303 = vmatpush.msra.mxu0 0.0
    %304 = vmatpush.msra.mxu0 0.0
    %305 = vmatpush.msra.mxu0 0.0
    %306 = vmatpush.msra.mxu0 0.0
    %307 = vmatpush.msra.mxu0 0.0
    %308 = vmatpush.msra.mxu0 0.0
    %309 = vmatpush.msra.mxu0 0.0
    %310 = vmatpush.msra.mxu0 %v46
    %311 = vmatpush.msra.mxu0 %v45
    %312 = vmatpush.msra.mxu0 %v44
    %313 = vmatpush.msra.mxu0 %v43
    %314 = vmatmul.f32.gmra.mxu0 %v211
    %v315 = vpop.f32.mrf.mxu0
    %v316 = vadd.f32 %v56, %v315
    %317 = vdwg.mxu0
    %v318 = vadd.f32 %v119, %v316
    %v319 = vxor.u32 %v318, 2147483648
    %v320 = vmul.f32 %v319, 1.442695
    %v321 = vpow.pop %v320
    %v322 = vadd.f32 %v321, 1.0
    %v323 = vrcp.pop %v322
    %v324 = vmul.f32 %v322, %v323
    %v325 = vsub.f32 1.0, %v324
    %v326 = vmul.f32 %v323, %v325
    %v327 = vadd.f32 %v323, %v326
    %vm328 = vweird.f32 %v322
    %vm329 = vweird.f32 %v323
    %vm330 = vmor %vm328, %vm329
    %v331 = vsel %vm330, %v323, %v327
    %v332 = vand.u32 2147483647, %v322
    %vm333 = vcmp.eq.f32.partialorder %v332, 8.507059e+37
    %v334 = vand.u32 %v322, 2147483648
    %v335 = vor.u32 1.1754944e-38, %v334
    %v336 = vsel %vm333, %v335, %v331
    %v337 = vmul.f32 1.0, %v336
    %339 = vrot.lane.b32.xlu0 %v316, 64
    %v340 = vpop.permute.xlu0 %339
    %v342 = vmul.f32 %v337, %v340
    %344 = vrot.lane.b32.xlu0 %v342, 64
    %v345 = vpop.permute.xlu0 %344
    %v347 = vadd.f32 %v119, %v345
    %v348 = vtanh.pop %v347
    %v349 = vsub.f32 1.0, %v337
    %351 = vrot.lane.b32.xlu0 %v348, 96
    %v352 = vpop.permute.xlu0 %351
    %v354 = vmul.f32 %v349, %v352
    %v355 = vmul.f32 %v337, %v207
    %v356 = vadd.f32 %v354, %v355
    %358 = vrot.lane.b32.xlu0 %v356, 96
    %v359 = vpop.permute.xlu0 %358
    %v360 = vsel %vm142, %v359, 0
    %362 = vmatpush.msra.mxu0 0.0
    %363 = vmatpush.msra.mxu0 0.0
    %364 = vmatpush.msra.mxu0 0.0
    %365 = vmatpush.msra.mxu0 0.0
    %366 = vmatpush.msra.mxu0 0.0
    %367 = vmatpush.msra.mxu0 0.0
    %368 = vmatpush.msra.mxu0 0.0
    %369 = vmatpush.msra.mxu0 0.0
    %370 = vmatpush.msra.mxu0 0.0
    %371 = vmatpush.msra.mxu0 0.0
    %372 = vmatpush.msra.mxu0 0.0
    %373 = vmatpush.msra.mxu0 0.0
    %374 = vmatpush.msra.mxu0 %v50
    %375 = vmatpush.msra.mxu0 %v49
    %376 = vmatpush.msra.mxu0 %v48
    %377 = vmatpush.msra.mxu0 %v47
    %378 = vmatmul.f32.gmra.mxu0 %v360
    %v379 = vpop.f32.mrf.mxu0
    %v380 = vadd.f32 %v57, %v379
    %381 = vdwg.mxu0
    %383 = vrot.lane.b32.xlu0 %v297, 96
    %v384 = vpop.permute.xlu0 %383
    %v385 = vsel %vm142, %v384, 0
    %387 = vmatpush.msra.mxu0 0.0
    %388 = vmatpush.msra.mxu0 0.0
    %389 = vmatpush.msra.mxu0 0.0
    %390 = vmatpush.msra.mxu0 0.0
    %391 = vmatpush.msra.mxu0 0.0
    %392 = vmatpush.msra.mxu0 0.0
    %393 = vmatpush.msra.mxu0 0.0
    %394 = vmatpush.msra.mxu0 0.0
    %395 = vmatpush.msra.mxu0 0.0
    %396 = vmatpush.msra.mxu0 0.0
    %397 = vmatpush.msra.mxu0 0.0
    %398 = vmatpush.msra.mxu0 0.0
    %399 = vmatpush.msra.mxu0 %v54
    %400 = vmatpush.msra.mxu0 %v53
    %401 = vmatpush.msra.mxu0 %v52
    %402 = vmatpush.msra.mxu0 %v51
    %403 = vmatmul.f32.gmra.mxu0 %v385
    %v404 = vpop.f32.mrf.mxu0
    %v405 = vadd.f32 %v58, %v404
    %406 = vdwg.mxu0
    %v407 = vadd.f32 %v380, %v405
    %v408 = vxor.u32 %v407, 2147483648
    %v409 = vmul.f32 %v408, 1.442695
    %v410 = vpow.pop %v409
    %v411 = vadd.f32 %v410, 1.0
    %v412 = vrcp.pop %v411
    %v413 = vmul.f32 %v411, %v412
    %v414 = vsub.f32 1.0, %v413
    %v415 = vmul.f32 %v412, %v414
    %v416 = vadd.f32 %v412, %v415
    %vm417 = vweird.f32 %v411
    %vm418 = vweird.f32 %v412
    %vm419 = vmor %vm417, %vm418
    %v420 = vsel %vm419, %v412, %v416
    %v421 = vand.u32 2147483647, %v411
    %vm422 = vcmp.eq.f32.partialorder %v421, 8.507059e+37
    %v423 = vand.u32 %v411, 2147483648
    %v424 = vor.u32 1.1754944e-38, %v423
    %v425 = vsel %vm422, %v424, %v420
    %v426 = vmul.f32 1.0, %v425
    %428 = vrot.lane.b32.xlu0 %v405, 64
    %v429 = vpop.permute.xlu0 %428
    %v431 = vmul.f32 %v426, %v429
    %433 = vrot.lane.b32.xlu0 %v431, 64
    %v434 = vpop.permute.xlu0 %433
    %v436 = vadd.f32 %v380, %v434
    %v437 = vtanh.pop %v436
    %v438 = vsub.f32 1.0, %v426
    %440 = vrot.lane.b32.xlu0 %v437, 96
    %v441 = vpop.permute.xlu0 %440
    %v443 = vmul.f32 %v438, %v441
    %v444 = vmul.f32 %v426, %v297
    %v445 = vadd.f32 %v443, %v444
    %446 = vmatpush.msra.mxu0 0.0
    %447 = vmatpush.msra.mxu0 0.0
    %448 = vmatpush.msra.mxu0 0.0
    %449 = vmatpush.msra.mxu0 0.0
    %450 = vmatpush.msra.mxu0 0.0
    %451 = vmatpush.msra.mxu0 0.0
    %452 = vmatpush.msra.mxu0 0.0
    %453 = vmatpush.msra.mxu0 0.0
    %454 = vmatpush.msra.mxu0 0.0
    %455 = vmatpush.msra.mxu0 0.0
    %456 = vmatpush.msra.mxu0 0.0
    %457 = vmatpush.msra.mxu0 0.0
    %458 = vmatpush.msra.mxu0 %v46
    %459 = vmatpush.msra.mxu0 %v45
    %460 = vmatpush.msra.mxu0 %v44
    %461 = vmatpush.msra.mxu0 %v43
    %462 = vmatmul.f32.gmra.mxu0 %v360
    %v463 = vpop.f32.mrf.mxu0
    %v464 = vadd.f32 %v56, %v463
    %465 = vdwg.mxu0
    %v466 = vadd.f32 %v122, %v464
    %v467 = vxor.u32 %v466, 2147483648
    %v468 = vmul.f32 %v467, 1.442695
    %v469 = vpow.pop %v468
    %v470 = vadd.f32 %v469, 1.0
    %v471 = vrcp.pop %v470
    %v472 = vmul.f32 %v470, %v471
    %v473 = vsub.f32 1.0, %v472
    %v474 = vmul.f32 %v471, %v473
    %v475 = vadd.f32 %v471, %v474
    %vm476 = vweird.f32 %v470
    %vm477 = vweird.f32 %v471
    %vm478 = vmor %vm476, %vm477
    %v479 = vsel %vm478, %v471, %v475
    %v480 = vand.u32 2147483647, %v470
    %vm481 = vcmp.eq.f32.partialorder %v480, 8.507059e+37
    %v482 = vand.u32 %v470, 2147483648
    %v483 = vor.u32 1.1754944e-38, %v482
    %v484 = vsel %vm481, %v483, %v479
    %v485 = vmul.f32 1.0, %v484
    %487 = vrot.lane.b32.xlu0 %v464, 64
    %v488 = vpop.permute.xlu0 %487
    %v490 = vmul.f32 %v485, %v488
    %492 = vrot.lane.b32.xlu0 %v490, 64
    %v493 = vpop.permute.xlu0 %492
    %v495 = vadd.f32 %v122, %v493
    %v496 = vtanh.pop %v495
    %v497 = vsub.f32 1.0, %v485
    %499 = vrot.lane.b32.xlu0 %v496, 96
    %v500 = vpop.permute.xlu0 %499
    %v502 = vmul.f32 %v497, %v500
    %v503 = vmul.f32 %v485, %v356
    %v504 = vadd.f32 %v502, %v503
    %506 = vrot.lane.b32.xlu0 %v504, 96
    %v507 = vpop.permute.xlu0 %506
    %v508 = vsel %vm142, %v507, 0
    %510 = vmatpush.msra.mxu0 0.0
    %511 = vmatpush.msra.mxu0 0.0
    %512 = vmatpush.msra.mxu0 0.0
    %513 = vmatpush.msra.mxu0 0.0
    %514 = vmatpush.msra.mxu0 0.0
    %515 = vmatpush.msra.mxu0 0.0
    %516 = vmatpush.msra.mxu0 0.0
    %517 = vmatpush.msra.mxu0 0.0
    %518 = vmatpush.msra.mxu0 0.0
    %519 = vmatpush.msra.mxu0 0.0
    %520 = vmatpush.msra.mxu0 0.0
    %521 = vmatpush.msra.mxu0 0.0
    %522 = vmatpush.msra.mxu0 %v50
    %523 = vmatpush.msra.mxu0 %v49
    %524 = vmatpush.msra.mxu0 %v48
    %525 = vmatpush.msra.mxu0 %v47
    %526 = vmatmul.f32.gmra.mxu0 %v508
    %v527 = vpop.f32.mrf.mxu0
    %v528 = vadd.f32 %v57, %v527
    %529 = vdwg.mxu0
    %531 = vrot.lane.b32.xlu0 %v445, 96
    %v532 = vpop.permute.xlu0 %531
    %v533 = vsel %vm142, %v532, 0
    %535 = vmatpush.msra.mxu0 0.0
    %536 = vmatpush.msra.mxu0 0.0
    %537 = vmatpush.msra.mxu0 0.0
    %538 = vmatpush.msra.mxu0 0.0
    %539 = vmatpush.msra.mxu0 0.0
    %540 = vmatpush.msra.mxu0 0.0
    %541 = vmatpush.msra.mxu0 0.0
    %542 = vmatpush.msra.mxu0 0.0
    %543 = vmatpush.msra.mxu0 0.0
    %544 = vmatpush.msra.mxu0 0.0
    %545 = vmatpush.msra.mxu0 0.0
    %546 = vmatpush.msra.mxu0 0.0
    %547 = vmatpush.msra.mxu0 %v54
    %548 = vmatpush.msra.mxu0 %v53
    %549 = vmatpush.msra.mxu0 %v52
    %550 = vmatpush.msra.mxu0 %v51
    %551 = vmatmul.f32.gmra.mxu0 %v533
    %v552 = vpop.f32.mrf.mxu0
    %v553 = vadd.f32 %v58, %v552
    %554 = vdwg.mxu0
    %v555 = vadd.f32 %v528, %v553
    %v556 = vxor.u32 %v555, 2147483648
    %v557 = vmul.f32 %v556, 1.442695
    %v558 = vpow.pop %v557
    %v559 = vadd.f32 %v558, 1.0
    %v560 = vrcp.pop %v559
    %v561 = vmul.f32 %v559, %v560
    %v562 = vsub.f32 1.0, %v561
    %v563 = vmul.f32 %v560, %v562
    %v564 = vadd.f32 %v560, %v563
    %vm565 = vweird.f32 %v559
    %vm566 = vweird.f32 %v560
    %vm567 = vmor %vm565, %vm566
    %v568 = vsel %vm567, %v560, %v564
    %v569 = vand.u32 2147483647, %v559
    %vm570 = vcmp.eq.f32.partialorder %v569, 8.507059e+37
    %v571 = vand.u32 %v559, 2147483648
    %v572 = vor.u32 1.1754944e-38, %v571
    %v573 = vsel %vm570, %v572, %v568
    %v574 = vmul.f32 1.0, %v573
    %576 = vrot.lane.b32.xlu0 %v553, 64
    %v577 = vpop.permute.xlu0 %576
    %v579 = vmul.f32 %v574, %v577
    %581 = vrot.lane.b32.xlu0 %v579, 64
    %v582 = vpop.permute.xlu0 %581
    %v584 = vadd.f32 %v528, %v582
    %v585 = vtanh.pop %v584
    %v586 = vsub.f32 1.0, %v574
    %588 = vrot.lane.b32.xlu0 %v585, 96
    %v589 = vpop.permute.xlu0 %588
    %v591 = vmul.f32 %v586, %v589
    %v592 = vmul.f32 %v574, %v445
    %v593 = vadd.f32 %v591, %v592
    %594 = vmatpush.msra.mxu0 0.0
    %595 = vmatpush.msra.mxu0 0.0
    %596 = vmatpush.msra.mxu0 0.0
    %597 = vmatpush.msra.mxu0 0.0
    %598 = vmatpush.msra.mxu0 0.0
    %599 = vmatpush.msra.mxu0 0.0
    %600 = vmatpush.msra.mxu0 0.0
    %601 = vmatpush.msra.mxu0 0.0
    %602 = vmatpush.msra.mxu0 0.0
    %603 = vmatpush.msra.mxu0 0.0
    %604 = vmatpush.msra.mxu0 0.0
    %605 = vmatpush.msra.mxu0 0.0
    %606 = vmatpush.msra.mxu0 %v46
    %607 = vmatpush.msra.mxu0 %v45
    %608 = vmatpush.msra.mxu0 %v44
    %609 = vmatpush.msra.mxu0 %v43
    %610 = vmatmul.f32.gmra.mxu0 %v508
    %v611 = vpop.f32.mrf.mxu0
    %v612 = vadd.f32 %v56, %v611
    %613 = vdwg.mxu0
    %v614 = vadd.f32 %v125, %v612
    %v615 = vxor.u32 %v614, 2147483648
    %v616 = vmul.f32 %v615, 1.442695
    %v617 = vpow.pop %v616
    %v618 = vadd.f32 %v617, 1.0
    %v619 = vrcp.pop %v618
    %v620 = vmul.f32 %v618, %v619
    %v621 = vsub.f32 1.0, %v620
    %v622 = vmul.f32 %v619, %v621
    %v623 = vadd.f32 %v619, %v622
    %vm624 = vweird.f32 %v618
    %vm625 = vweird.f32 %v619
    %vm626 = vmor %vm624, %vm625
    %v627 = vsel %vm626, %v619, %v623
    %v628 = vand.u32 2147483647, %v618
    %vm629 = vcmp.eq.f32.partialorder %v628, 8.507059e+37
    %v630 = vand.u32 %v618, 2147483648
    %v631 = vor.u32 1.1754944e-38, %v630
    %v632 = vsel %vm629, %v631, %v627
    %v633 = vmul.f32 1.0, %v632
    %635 = vrot.lane.b32.xlu0 %v612, 64
    %v636 = vpop.permute.xlu0 %635
    %v638 = vmul.f32 %v633, %v636
    %640 = vrot.lane.b32.xlu0 %v638, 64
    %v641 = vpop.permute.xlu0 %640
    %v643 = vadd.f32 %v125, %v641
    %v644 = vtanh.pop %v643
    %v645 = vsub.f32 1.0, %v633
    %647 = vrot.lane.b32.xlu0 %v644, 96
    %v648 = vpop.permute.xlu0 %647
    %v650 = vmul.f32 %v645, %v648
    %v651 = vmul.f32 %v633, %v504
    %v652 = vadd.f32 %v650, %v651
    %654 = vrot.lane.b32.xlu0 %v652, 96
    %v655 = vpop.permute.xlu0 %654
    %v656 = vsel %vm142, %v655, 0
    %658 = vmatpush.msra.mxu0 0.0
    %659 = vmatpush.msra.mxu0 0.0
    %660 = vmatpush.msra.mxu0 0.0
    %661 = vmatpush.msra.mxu0 0.0
    %662 = vmatpush.msra.mxu0 0.0
    %663 = vmatpush.msra.mxu0 0.0
    %664 = vmatpush.msra.mxu0 0.0
    %665 = vmatpush.msra.mxu0 0.0
    %666 = vmatpush.msra.mxu0 0.0
    %667 = vmatpush.msra.mxu0 0.0
    %668 = vmatpush.msra.mxu0 0.0
    %669 = vmatpush.msra.mxu0 0.0
    %670 = vmatpush.msra.mxu0 %v50
    %671 = vmatpush.msra.mxu0 %v49
    %672 = vmatpush.msra.mxu0 %v48
    %673 = vmatpush.msra.mxu0 %v47
    %674 = vmatmul.f32.gmra.mxu0 %v656
    %v675 = vpop.f32.mrf.mxu0
    %v676 = vadd.f32 %v57, %v675
    %677 = vdwg.mxu0
    %679 = vrot.lane.b32.xlu0 %v593, 96
    %v680 = vpop.permute.xlu0 %679
    %v681 = vsel %vm142, %v680, 0
    %683 = vmatpush.msra.mxu0 0.0
    %684 = vmatpush.msra.mxu0 0.0
    %685 = vmatpush.msra.mxu0 0.0
    %686 = vmatpush.msra.mxu0 0.0
    %687 = vmatpush.msra.mxu0 0.0
    %688 = vmatpush.msra.mxu0 0.0
    %689 = vmatpush.msra.mxu0 0.0
    %690 = vmatpush.msra.mxu0 0.0
    %691 = vmatpush.msra.mxu0 0.0
    %692 = vmatpush.msra.mxu0 0.0
    %693 = vmatpush.msra.mxu0 0.0
    %694 = vmatpush.msra.mxu0 0.0
    %695 = vmatpush.msra.mxu0 %v54
    %696 = vmatpush.msra.mxu0 %v53
    %697 = vmatpush.msra.mxu0 %v52
    %698 = vmatpush.msra.mxu0 %v51
    %699 = vmatmul.f32.gmra.mxu0 %v681
    %v700 = vpop.f32.mrf.mxu0
    %v701 = vadd.f32 %v58, %v700
    %702 = vdwg.mxu0
    %v703 = vadd.f32 %v676, %v701
    %v704 = vxor.u32 %v703, 2147483648
    %v705 = vmul.f32 %v704, 1.442695
    %v706 = vpow.pop %v705
    %v707 = vadd.f32 %v706, 1.0
    %v708 = vrcp.pop %v707
    %v709 = vmul.f32 %v707, %v708
    %v710 = vsub.f32 1.0, %v709
    %v711 = vmul.f32 %v708, %v710
    %v712 = vadd.f32 %v708, %v711
    %vm713 = vweird.f32 %v707
    %vm714 = vweird.f32 %v708
    %vm715 = vmor %vm713, %vm714
    %v716 = vsel %vm715, %v708, %v712
    %v717 = vand.u32 2147483647, %v707
    %vm718 = vcmp.eq.f32.partialorder %v717, 8.507059e+37
    %v719 = vand.u32 %v707, 2147483648
    %v720 = vor.u32 1.1754944e-38, %v719
    %v721 = vsel %vm718, %v720, %v716
    %v722 = vmul.f32 1.0, %v721
    %724 = vrot.lane.b32.xlu0 %v701, 64
    %v725 = vpop.permute.xlu0 %724
    %v727 = vmul.f32 %v722, %v725
    %729 = vrot.lane.b32.xlu0 %v727, 64
    %v730 = vpop.permute.xlu0 %729
    %v732 = vadd.f32 %v676, %v730
    %v733 = vtanh.pop %v732
    %v734 = vsub.f32 1.0, %v722
    %736 = vrot.lane.b32.xlu0 %v733, 96
    %v737 = vpop.permute.xlu0 %736
    %v739 = vmul.f32 %v734, %v737
    %v740 = vmul.f32 %v722, %v593
    %v741 = vadd.f32 %v739, %v740
    %742 = vmatpush.msra.mxu0 0.0
    %743 = vmatpush.msra.mxu0 0.0
    %744 = vmatpush.msra.mxu0 0.0
    %745 = vmatpush.msra.mxu0 0.0
    %746 = vmatpush.msra.mxu0 0.0
    %747 = vmatpush.msra.mxu0 0.0
    %748 = vmatpush.msra.mxu0 0.0
    %749 = vmatpush.msra.mxu0 0.0
    %750 = vmatpush.msra.mxu0 0.0
    %751 = vmatpush.msra.mxu0 0.0
    %752 = vmatpush.msra.mxu0 0.0
    %753 = vmatpush.msra.mxu0 0.0
    %754 = vmatpush.msra.mxu0 %v46
    %755 = vmatpush.msra.mxu0 %v45
    %756 = vmatpush.msra.mxu0 %v44
    %757 = vmatpush.msra.mxu0 %v43
    %758 = vmatmul.f32.gmra.mxu0 %v656
    %v759 = vpop.f32.mrf.mxu0
    %v760 = vadd.f32 %v56, %v759
    %761 = vdwg.mxu0
    %v762 = vadd.f32 %v128, %v760
    %v763 = vxor.u32 %v762, 2147483648
    %v764 = vmul.f32 %v763, 1.442695
    %v765 = vpow.pop %v764
    %v766 = vadd.f32 %v765, 1.0
    %v767 = vrcp.pop %v766
    %v768 = vmul.f32 %v766, %v767
    %v769 = vsub.f32 1.0, %v768
    %v770 = vmul.f32 %v767, %v769
    %v771 = vadd.f32 %v767, %v770
    %vm772 = vweird.f32 %v766
    %vm773 = vweird.f32 %v767
    %vm774 = vmor %vm772, %vm773
    %v775 = vsel %vm774, %v767, %v771
    %v776 = vand.u32 2147483647, %v766
    %vm777 = vcmp.eq.f32.partialorder %v776, 8.507059e+37
    %v778 = vand.u32 %v766, 2147483648
    %v779 = vor.u32 1.1754944e-38, %v778
    %v780 = vsel %vm777, %v779, %v775
    %v781 = vmul.f32 1.0, %v780
    %783 = vrot.lane.b32.xlu0 %v760, 64
    %v784 = vpop.permute.xlu0 %783
    %v786 = vmul.f32 %v781, %v784
    %788 = vrot.lane.b32.xlu0 %v786, 64
    %v789 = vpop.permute.xlu0 %788
    %v791 = vadd.f32 %v128, %v789
    %v792 = vtanh.pop %v791
    %v793 = vsub.f32 1.0, %v781
    %795 = vrot.lane.b32.xlu0 %v792, 96
    %v796 = vpop.permute.xlu0 %795
    %v798 = vmul.f32 %v793, %v796
    %v799 = vmul.f32 %v781, %v652
    %v800 = vadd.f32 %v798, %v799
    %802 = vrot.lane.b32.xlu0 %v800, 96
    %v803 = vpop.permute.xlu0 %802
    %v804 = vsel %vm142, %v803, 0
    %806 = vmatpush.msra.mxu0 0.0
    %807 = vmatpush.msra.mxu0 0.0
    %808 = vmatpush.msra.mxu0 0.0
    %809 = vmatpush.msra.mxu0 0.0
    %810 = vmatpush.msra.mxu0 0.0
    %811 = vmatpush.msra.mxu0 0.0
    %812 = vmatpush.msra.mxu0 0.0
    %813 = vmatpush.msra.mxu0 0.0
    %814 = vmatpush.msra.mxu0 0.0
    %815 = vmatpush.msra.mxu0 0.0
    %816 = vmatpush.msra.mxu0 0.0
    %817 = vmatpush.msra.mxu0 0.0
    %818 = vmatpush.msra.mxu0 %v50
    %819 = vmatpush.msra.mxu0 %v49
    %820 = vmatpush.msra.mxu0 %v48
    %821 = vmatpush.msra.mxu0 %v47
    %822 = vmatmul.f32.gmra.mxu0 %v804
    %v823 = vpop.f32.mrf.mxu0
    %v824 = vadd.f32 %v57, %v823
    %825 = vdwg.mxu0
    %827 = vrot.lane.b32.xlu0 %v741, 96
    %v828 = vpop.permute.xlu0 %827
    %v829 = vsel %vm142, %v828, 0
    %831 = vmatpush.msra.mxu0 0.0
    %832 = vmatpush.msra.mxu0 0.0
    %833 = vmatpush.msra.mxu0 0.0
    %834 = vmatpush.msra.mxu0 0.0
    %835 = vmatpush.msra.mxu0 0.0
    %836 = vmatpush.msra.mxu0 0.0
    %837 = vmatpush.msra.mxu0 0.0
    %838 = vmatpush.msra.mxu0 0.0
    %839 = vmatpush.msra.mxu0 0.0
    %840 = vmatpush.msra.mxu0 0.0
    %841 = vmatpush.msra.mxu0 0.0
    %842 = vmatpush.msra.mxu0 0.0
    %843 = vmatpush.msra.mxu0 %v54
    %844 = vmatpush.msra.mxu0 %v53
    %845 = vmatpush.msra.mxu0 %v52
    %846 = vmatpush.msra.mxu0 %v51
    %847 = vmatmul.f32.gmra.mxu0 %v829
    %v848 = vpop.f32.mrf.mxu0
    %v849 = vadd.f32 %v58, %v848
    %850 = vdwg.mxu0
    %v851 = vadd.f32 %v824, %v849
    %v852 = vxor.u32 %v851, 2147483648
    %v853 = vmul.f32 %v852, 1.442695
    %v854 = vpow.pop %v853
    %v855 = vadd.f32 %v854, 1.0
    %v856 = vrcp.pop %v855
    %v857 = vmul.f32 %v855, %v856
    %v858 = vsub.f32 1.0, %v857
    %v859 = vmul.f32 %v856, %v858
    %v860 = vadd.f32 %v856, %v859
    %vm861 = vweird.f32 %v855
    %vm862 = vweird.f32 %v856
    %vm863 = vmor %vm861, %vm862
    %v864 = vsel %vm863, %v856, %v860
    %v865 = vand.u32 2147483647, %v855
    %vm866 = vcmp.eq.f32.partialorder %v865, 8.507059e+37
    %v867 = vand.u32 %v855, 2147483648
    %v868 = vor.u32 1.1754944e-38, %v867
    %v869 = vsel %vm866, %v868, %v864
    %v870 = vmul.f32 1.0, %v869
    %872 = vrot.lane.b32.xlu0 %v849, 64
    %v873 = vpop.permute.xlu0 %872
    %v875 = vmul.f32 %v870, %v873
    %877 = vrot.lane.b32.xlu0 %v875, 64
    %v878 = vpop.permute.xlu0 %877
    %v880 = vadd.f32 %v824, %v878
    %v881 = vtanh.pop %v880
    %v882 = vsub.f32 1.0, %v870
    %884 = vrot.lane.b32.xlu0 %v881, 96
    %v885 = vpop.permute.xlu0 %884
    %v887 = vmul.f32 %v882, %v885
    %v888 = vmul.f32 %v870, %v741
    %v889 = vadd.f32 %v887, %v888
    %890 = vmatpush.msra.mxu0 0.0
    %891 = vmatpush.msra.mxu0 0.0
    %892 = vmatpush.msra.mxu0 0.0
    %893 = vmatpush.msra.mxu0 0.0
    %894 = vmatpush.msra.mxu0 0.0
    %895 = vmatpush.msra.mxu0 0.0
    %896 = vmatpush.msra.mxu0 0.0
    %897 = vmatpush.msra.mxu0 0.0
    %898 = vmatpush.msra.mxu0 0.0
    %899 = vmatpush.msra.mxu0 0.0
    %900 = vmatpush.msra.mxu0 0.0
    %901 = vmatpush.msra.mxu0 0.0
    %902 = vmatpush.msra.mxu0 %v46
    %903 = vmatpush.msra.mxu0 %v45
    %904 = vmatpush.msra.mxu0 %v44
    %905 = vmatpush.msra.mxu0 %v43
    %906 = vmatmul.f32.gmra.mxu0 %v804
    %v907 = vpop.f32.mrf.mxu0
    %v908 = vadd.f32 %v56, %v907
    %909 = vdwg.mxu0
    %v910 = vadd.f32 %v131, %v908
    %v911 = vxor.u32 %v910, 2147483648
    %v912 = vmul.f32 %v911, 1.442695
    %v913 = vpow.pop %v912
    %v914 = vadd.f32 %v913, 1.0
    %v915 = vrcp.pop %v914
    %v916 = vmul.f32 %v914, %v915
    %v917 = vsub.f32 1.0, %v916
    %v918 = vmul.f32 %v915, %v917
    %v919 = vadd.f32 %v915, %v918
    %vm920 = vweird.f32 %v914
    %vm921 = vweird.f32 %v915
    %vm922 = vmor %vm920, %vm921
    %v923 = vsel %vm922, %v915, %v919
    %v924 = vand.u32 2147483647, %v914
    %vm925 = vcmp.eq.f32.partialorder %v924, 8.507059e+37
    %v926 = vand.u32 %v914, 2147483648
    %v927 = vor.u32 1.1754944e-38, %v926
    %v928 = vsel %vm925, %v927, %v923
    %v929 = vmul.f32 1.0, %v928
    %931 = vrot.lane.b32.xlu0 %v908, 64
    %v932 = vpop.permute.xlu0 %931
    %v934 = vmul.f32 %v929, %v932
    %936 = vrot.lane.b32.xlu0 %v934, 64
    %v937 = vpop.permute.xlu0 %936
    %v939 = vadd.f32 %v131, %v937
    %v940 = vtanh.pop %v939
    %v941 = vsub.f32 1.0, %v929
    %943 = vrot.lane.b32.xlu0 %v940, 96
    %v944 = vpop.permute.xlu0 %943
    %v946 = vmul.f32 %v941, %v944
    %v947 = vmul.f32 %v929, %v800
    %v948 = vadd.f32 %v946, %v947
    %950 = vrot.lane.b32.xlu0 %v948, 96
    %v951 = vpop.permute.xlu0 %950
    %v952 = vsel %vm142, %v951, 0
    %954 = vmatpush.msra.mxu0 0.0
    %955 = vmatpush.msra.mxu0 0.0
    %956 = vmatpush.msra.mxu0 0.0
    %957 = vmatpush.msra.mxu0 0.0
    %958 = vmatpush.msra.mxu0 0.0
    %959 = vmatpush.msra.mxu0 0.0
    %960 = vmatpush.msra.mxu0 0.0
    %961 = vmatpush.msra.mxu0 0.0
    %962 = vmatpush.msra.mxu0 0.0
    %963 = vmatpush.msra.mxu0 0.0
    %964 = vmatpush.msra.mxu0 0.0
    %965 = vmatpush.msra.mxu0 0.0
    %966 = vmatpush.msra.mxu0 %v50
    %967 = vmatpush.msra.mxu0 %v49
    %968 = vmatpush.msra.mxu0 %v48
    %969 = vmatpush.msra.mxu0 %v47
    %970 = vmatmul.f32.gmra.mxu0 %v952
    %v971 = vpop.f32.mrf.mxu0
    %v972 = vadd.f32 %v57, %v971
    %973 = vdwg.mxu0
    %975 = vrot.lane.b32.xlu0 %v889, 96
    %v976 = vpop.permute.xlu0 %975
    %v977 = vsel %vm142, %v976, 0
    %979 = vmatpush.msra.mxu0 0.0
    %980 = vmatpush.msra.mxu0 0.0
    %981 = vmatpush.msra.mxu0 0.0
    %982 = vmatpush.msra.mxu0 0.0
    %983 = vmatpush.msra.mxu0 0.0
    %984 = vmatpush.msra.mxu0 0.0
    %985 = vmatpush.msra.mxu0 0.0
    %986 = vmatpush.msra.mxu0 0.0
    %987 = vmatpush.msra.mxu0 0.0
    %988 = vmatpush.msra.mxu0 0.0
    %989 = vmatpush.msra.mxu0 0.0
    %990 = vmatpush.msra.mxu0 0.0
    %991 = vmatpush.msra.mxu0 %v54
    %992 = vmatpush.msra.mxu0 %v53
    %993 = vmatpush.msra.mxu0 %v52
    %994 = vmatpush.msra.mxu0 %v51
    %995 = vmatmul.f32.gmra.mxu0 %v977
    %v996 = vpop.f32.mrf.mxu0
    %v997 = vadd.f32 %v58, %v996
    %998 = vdwg.mxu0
    %v999 = vadd.f32 %v972, %v997
    %v1000 = vxor.u32 %v999, 2147483648
    %v1001 = vmul.f32 %v1000, 1.442695
    %v1002 = vpow.pop %v1001
    %v1003 = vadd.f32 %v1002, 1.0
    %v1004 = vrcp.pop %v1003
    %v1005 = vmul.f32 %v1003, %v1004
    %v1006 = vsub.f32 1.0, %v1005
    %v1007 = vmul.f32 %v1004, %v1006
    %v1008 = vadd.f32 %v1004, %v1007
    %vm1009 = vweird.f32 %v1003
    %vm1010 = vweird.f32 %v1004
    %vm1011 = vmor %vm1009, %vm1010
    %v1012 = vsel %vm1011, %v1004, %v1008
    %v1013 = vand.u32 2147483647, %v1003
    %vm1014 = vcmp.eq.f32.partialorder %v1013, 8.507059e+37
    %v1015 = vand.u32 %v1003, 2147483648
    %v1016 = vor.u32 1.1754944e-38, %v1015
    %v1017 = vsel %vm1014, %v1016, %v1012
    %v1018 = vmul.f32 1.0, %v1017
    %1020 = vrot.lane.b32.xlu0 %v997, 64
    %v1021 = vpop.permute.xlu0 %1020
    %v1023 = vmul.f32 %v1018, %v1021
    %1025 = vrot.lane.b32.xlu0 %v1023, 64
    %v1026 = vpop.permute.xlu0 %1025
    %v1028 = vadd.f32 %v972, %v1026
    %v1029 = vtanh.pop %v1028
    %v1030 = vsub.f32 1.0, %v1018
    %1032 = vrot.lane.b32.xlu0 %v1029, 96
    %v1033 = vpop.permute.xlu0 %1032
    %v1035 = vmul.f32 %v1030, %v1033
    %v1036 = vmul.f32 %v1018, %v889
    %v1037 = vadd.f32 %v1035, %v1036
    %1038 = vmatpush.msra.mxu0 0.0
    %1039 = vmatpush.msra.mxu0 0.0
    %1040 = vmatpush.msra.mxu0 0.0
    %1041 = vmatpush.msra.mxu0 0.0
    %1042 = vmatpush.msra.mxu0 0.0
    %1043 = vmatpush.msra.mxu0 0.0
    %1044 = vmatpush.msra.mxu0 0.0
    %1045 = vmatpush.msra.mxu0 0.0
    %1046 = vmatpush.msra.mxu0 0.0
    %1047 = vmatpush.msra.mxu0 0.0
    %1048 = vmatpush.msra.mxu0 0.0
    %1049 = vmatpush.msra.mxu0 0.0
    %1050 = vmatpush.msra.mxu0 %v46
    %1051 = vmatpush.msra.mxu0 %v45
    %1052 = vmatpush.msra.mxu0 %v44
    %1053 = vmatpush.msra.mxu0 %v43
    %1054 = vmatmul.f32.gmra.mxu0 %v952
    %v1055 = vpop.f32.mrf.mxu0
    %v1056 = vadd.f32 %v56, %v1055
    %1057 = vdwg.mxu0
    %v1058 = vadd.f32 %v134, %v1056
    %v1059 = vxor.u32 %v1058, 2147483648
    %v1060 = vmul.f32 %v1059, 1.442695
    %v1061 = vpow.pop %v1060
    %v1062 = vadd.f32 %v1061, 1.0
    %v1063 = vrcp.pop %v1062
    %v1064 = vmul.f32 %v1062, %v1063
    %v1065 = vsub.f32 1.0, %v1064
    %v1066 = vmul.f32 %v1063, %v1065
    %v1067 = vadd.f32 %v1063, %v1066
    %vm1068 = vweird.f32 %v1062
    %vm1069 = vweird.f32 %v1063
    %vm1070 = vmor %vm1068, %vm1069
    %v1071 = vsel %vm1070, %v1063, %v1067
    %v1072 = vand.u32 2147483647, %v1062
    %vm1073 = vcmp.eq.f32.partialorder %v1072, 8.507059e+37
    %v1074 = vand.u32 %v1062, 2147483648
    %v1075 = vor.u32 1.1754944e-38, %v1074
    %v1076 = vsel %vm1073, %v1075, %v1071
    %v1077 = vmul.f32 1.0, %v1076
    %1079 = vrot.lane.b32.xlu0 %v1056, 64
    %v1080 = vpop.permute.xlu0 %1079
    %v1082 = vmul.f32 %v1077, %v1080
    %1084 = vrot.lane.b32.xlu0 %v1082, 64
    %v1085 = vpop.permute.xlu0 %1084
    %v1087 = vadd.f32 %v134, %v1085
    %v1088 = vtanh.pop %v1087
    %v1089 = vsub.f32 1.0, %v1077
    %1091 = vrot.lane.b32.xlu0 %v1088, 96
    %v1092 = vpop.permute.xlu0 %1091
    %v1094 = vmul.f32 %v1089, %v1092
    %v1095 = vmul.f32 %v1077, %v948
    %v1096 = vadd.f32 %v1094, %v1095
    %1098 = vrot.lane.b32.xlu0 %v1096, 96
    %v1099 = vpop.permute.xlu0 %1098
    %v1100 = vsel %vm142, %v1099, 0
    %1102 = vmatpush.msra.mxu0 0.0
    %1103 = vmatpush.msra.mxu0 0.0
    %1104 = vmatpush.msra.mxu0 0.0
    %1105 = vmatpush.msra.mxu0 0.0
    %1106 = vmatpush.msra.mxu0 0.0
    %1107 = vmatpush.msra.mxu0 0.0
    %1108 = vmatpush.msra.mxu0 0.0
    %1109 = vmatpush.msra.mxu0 0.0
    %1110 = vmatpush.msra.mxu0 0.0
    %1111 = vmatpush.msra.mxu0 0.0
    %1112 = vmatpush.msra.mxu0 0.0
    %1113 = vmatpush.msra.mxu0 0.0
    %1114 = vmatpush.msra.mxu0 %v50
    %1115 = vmatpush.msra.mxu0 %v49
    %1116 = vmatpush.msra.mxu0 %v48
    %1117 = vmatpush.msra.mxu0 %v47
    %1118 = vmatmul.f32.gmra.mxu0 %v1100
    %v1119 = vpop.f32.mrf.mxu0
    %v1120 = vadd.f32 %v57, %v1119
    %1121 = vdwg.mxu0
    %1123 = vrot.lane.b32.xlu0 %v1037, 96
    %v1124 = vpop.permute.xlu0 %1123
    %v1125 = vsel %vm142, %v1124, 0
    %1127 = vmatpush.msra.mxu0 0.0
    %1128 = vmatpush.msra.mxu0 0.0
    %1129 = vmatpush.msra.mxu0 0.0
    %1130 = vmatpush.msra.mxu0 0.0
    %1131 = vmatpush.msra.mxu0 0.0
    %1132 = vmatpush.msra.mxu0 0.0
    %1133 = vmatpush.msra.mxu0 0.0
    %1134 = vmatpush.msra.mxu0 0.0
    %1135 = vmatpush.msra.mxu0 0.0
    %1136 = vmatpush.msra.mxu0 0.0
    %1137 = vmatpush.msra.mxu0 0.0
    %1138 = vmatpush.msra.mxu0 0.0
    %1139 = vmatpush.msra.mxu0 %v54
    %1140 = vmatpush.msra.mxu0 %v53
    %1141 = vmatpush.msra.mxu0 %v52
    %1142 = vmatpush.msra.mxu0 %v51
    %1143 = vmatmul.f32.gmra.mxu0 %v1125
    %v1144 = vpop.f32.mrf.mxu0
    %v1145 = vadd.f32 %v58, %v1144
    %1146 = vdwg.mxu0
    %v1147 = vadd.f32 %v1120, %v1145
    %v1148 = vxor.u32 %v1147, 2147483648
    %v1149 = vmul.f32 %v1148, 1.442695
    %v1150 = vpow.pop %v1149
    %v1151 = vadd.f32 %v1150, 1.0
    %v1152 = vrcp.pop %v1151
    %v1153 = vmul.f32 %v1151, %v1152
    %v1154 = vsub.f32 1.0, %v1153
    %v1155 = vmul.f32 %v1152, %v1154
    %v1156 = vadd.f32 %v1152, %v1155
    %vm1157 = vweird.f32 %v1151
    %vm1158 = vweird.f32 %v1152
    %vm1159 = vmor %vm1157, %vm1158
    %v1160 = vsel %vm1159, %v1152, %v1156
    %v1161 = vand.u32 2147483647, %v1151
    %vm1162 = vcmp.eq.f32.partialorder %v1161, 8.507059e+37
    %v1163 = vand.u32 %v1151, 2147483648
    %v1164 = vor.u32 1.1754944e-38, %v1163
    %v1165 = vsel %vm1162, %v1164, %v1160
    %v1166 = vmul.f32 1.0, %v1165
    %1168 = vrot.lane.b32.xlu0 %v1145, 64
    %v1169 = vpop.permute.xlu0 %1168
    %v1171 = vmul.f32 %v1166, %v1169
    %1173 = vrot.lane.b32.xlu0 %v1171, 64
    %v1174 = vpop.permute.xlu0 %1173
    %v1176 = vadd.f32 %v1120, %v1174
    %v1177 = vtanh.pop %v1176
    %v1178 = vsub.f32 1.0, %v1166
    %1180 = vrot.lane.b32.xlu0 %v1177, 96
    %v1181 = vpop.permute.xlu0 %1180
    %v1183 = vmul.f32 %v1178, %v1181
    %v1184 = vmul.f32 %v1166, %v1037
    %v1185 = vadd.f32 %v1183, %v1184
    %1186 = vmatpush.msra.mxu0 0.0
    %1187 = vmatpush.msra.mxu0 0.0
    %1188 = vmatpush.msra.mxu0 0.0
    %1189 = vmatpush.msra.mxu0 0.0
    %1190 = vmatpush.msra.mxu0 0.0
    %1191 = vmatpush.msra.mxu0 0.0
    %1192 = vmatpush.msra.mxu0 0.0
    %1193 = vmatpush.msra.mxu0 0.0
    %1194 = vmatpush.msra.mxu0 0.0
    %1195 = vmatpush.msra.mxu0 0.0
    %1196 = vmatpush.msra.mxu0 0.0
    %1197 = vmatpush.msra.mxu0 0.0
    %1198 = vmatpush.msra.mxu0 %v46
    %1199 = vmatpush.msra.mxu0 %v45
    %1200 = vmatpush.msra.mxu0 %v44
    %1201 = vmatpush.msra.mxu0 %v43
    %1202 = vmatmul.f32.gmra.mxu0 %v1100
    %v1203 = vpop.f32.mrf.mxu0
    %v1204 = vadd.f32 %v56, %v1203
    %1205 = vdwg.mxu0
    %v1206 = vadd.f32 %v137, %v1204
    %v1207 = vxor.u32 %v1206, 2147483648
    %v1208 = vmul.f32 %v1207, 1.442695
    %v1209 = vpow.pop %v1208
    %v1210 = vadd.f32 %v1209, 1.0
    %v1211 = vrcp.pop %v1210
    %v1212 = vmul.f32 %v1210, %v1211
    %v1213 = vsub.f32 1.0, %v1212
    %v1214 = vmul.f32 %v1211, %v1213
    %v1215 = vadd.f32 %v1211, %v1214
    %vm1216 = vweird.f32 %v1210
    %vm1217 = vweird.f32 %v1211
    %vm1218 = vmor %vm1216, %vm1217
    %v1219 = vsel %vm1218, %v1211, %v1215
    %v1220 = vand.u32 2147483647, %v1210
    %vm1221 = vcmp.eq.f32.partialorder %v1220, 8.507059e+37
    %v1222 = vand.u32 %v1210, 2147483648
    %v1223 = vor.u32 1.1754944e-38, %v1222
    %v1224 = vsel %vm1221, %v1223, %v1219
    %v1225 = vmul.f32 1.0, %v1224
    %1227 = vrot.lane.b32.xlu0 %v1204, 64
    %v1228 = vpop.permute.xlu0 %1227
    %v1230 = vmul.f32 %v1225, %v1228
    %1232 = vrot.lane.b32.xlu0 %v1230, 64
    %v1233 = vpop.permute.xlu0 %1232
    %v1235 = vadd.f32 %v137, %v1233
    %v1236 = vtanh.pop %v1235
    %v1237 = vsub.f32 1.0, %v1225
    %1239 = vrot.lane.b32.xlu0 %v1236, 96
    %v1240 = vpop.permute.xlu0 %1239
    %v1242 = vmul.f32 %v1237, %v1240
    %v1243 = vmul.f32 %v1225, %v1096
    %v1244 = vadd.f32 %v1242, %v1243
    %1246 = vrot.lane.b32.xlu0 %v1244, 96
    %v1247 = vpop.permute.xlu0 %1246
    %v1248 = vsel %vm142, %v1247, 0
    %1250 = vmatpush.msra.mxu0 0.0
    %1251 = vmatpush.msra.mxu0 0.0
    %1252 = vmatpush.msra.mxu0 0.0
    %1253 = vmatpush.msra.mxu0 0.0
    %1254 = vmatpush.msra.mxu0 0.0
    %1255 = vmatpush.msra.mxu0 0.0
    %1256 = vmatpush.msra.mxu0 0.0
    %1257 = vmatpush.msra.mxu0 0.0
    %1258 = vmatpush.msra.mxu0 0.0
    %1259 = vmatpush.msra.mxu0 0.0
    %1260 = vmatpush.msra.mxu0 0.0
    %1261 = vmatpush.msra.mxu0 0.0
    %1262 = vmatpush.msra.mxu0 %v50
    %1263 = vmatpush.msra.mxu0 %v49
    %1264 = vmatpush.msra.mxu0 %v48
    %1265 = vmatpush.msra.mxu0 %v47
    %1266 = vmatmul.f32.gmra.mxu0 %v1248
    %v1267 = vpop.f32.mrf.mxu0
    %v1268 = vadd.f32 %v57, %v1267
    %1269 = vdwg.mxu0
    %1271 = vrot.lane.b32.xlu0 %v1185, 96
    %v1272 = vpop.permute.xlu0 %1271
    %v1273 = vsel %vm142, %v1272, 0
    %1275 = vmatpush.msra.mxu0 0.0
    %1276 = vmatpush.msra.mxu0 0.0
    %1277 = vmatpush.msra.mxu0 0.0
    %1278 = vmatpush.msra.mxu0 0.0
    %1279 = vmatpush.msra.mxu0 0.0
    %1280 = vmatpush.msra.mxu0 0.0
    %1281 = vmatpush.msra.mxu0 0.0
    %1282 = vmatpush.msra.mxu0 0.0
    %1283 = vmatpush.msra.mxu0 0.0
    %1284 = vmatpush.msra.mxu0 0.0
    %1285 = vmatpush.msra.mxu0 0.0
    %1286 = vmatpush.msra.mxu0 0.0
    %1287 = vmatpush.msra.mxu0 %v54
    %1288 = vmatpush.msra.mxu0 %v53
    %1289 = vmatpush.msra.mxu0 %v52
    %1290 = vmatpush.msra.mxu0 %v51
    %1291 = vmatmul.f32.gmra.mxu0 %v1273
    %v1292 = vpop.f32.mrf.mxu0
    %v1293 = vadd.f32 %v58, %v1292
    %1294 = vdwg.mxu0
    %v1295 = vadd.f32 %v1268, %v1293
    %v1296 = vxor.u32 %v1295, 2147483648
    %v1297 = vmul.f32 %v1296, 1.442695
    %v1298 = vpow.pop %v1297
    %v1299 = vadd.f32 %v1298, 1.0
    %v1300 = vrcp.pop %v1299
    %v1301 = vmul.f32 %v1299, %v1300
    %v1302 = vsub.f32 1.0, %v1301
    %v1303 = vmul.f32 %v1300, %v1302
    %v1304 = vadd.f32 %v1300, %v1303
    %vm1305 = vweird.f32 %v1299
    %vm1306 = vweird.f32 %v1300
    %vm1307 = vmor %vm1305, %vm1306
    %v1308 = vsel %vm1307, %v1300, %v1304
    %v1309 = vand.u32 2147483647, %v1299
    %vm1310 = vcmp.eq.f32.partialorder %v1309, 8.507059e+37
    %v1311 = vand.u32 %v1299, 2147483648
    %v1312 = vor.u32 1.1754944e-38, %v1311
    %v1313 = vsel %vm1310, %v1312, %v1308
    %v1314 = vmul.f32 1.0, %v1313
    %1316 = vrot.lane.b32.xlu0 %v1293, 64
    %v1317 = vpop.permute.xlu0 %1316
    %v1319 = vmul.f32 %v1314, %v1317
    %1321 = vrot.lane.b32.xlu0 %v1319, 64
    %v1322 = vpop.permute.xlu0 %1321
    %v1324 = vadd.f32 %v1268, %v1322
    %v1325 = vtanh.pop %v1324
    %v1326 = vsub.f32 1.0, %v1314
    %1328 = vrot.lane.b32.xlu0 %v1325, 96
    %v1329 = vpop.permute.xlu0 %1328
    %v1331 = vmul.f32 %v1326, %v1329
    %v1332 = vmul.f32 %v1314, %v1185
    %v1333 = vadd.f32 %v1331, %v1332
    %1335 = vst.msk [vmem:[#allocation5] sm:$0xff] %vm142, %v1247
    %1337 = vrot.lane.b32.xlu0 %v1333, 96
    %v1338 = vpop.permute.xlu0 %1337
    %s1340 = scalar_lea.vmem [#allocation5], 8
    %1341 = vst.msk [vmem:[%s1340] sm:$0xff] %vm142, %v1338
    %v1342 = vperm.slane %v63, 0
    %v1343 = vsel %vm142, %v1338, 0
    %1345 = vmatpush.msra.mxu0 0.0
    %1346 = vmatpush.msra.mxu0 0.0
    %1347 = vmatpush.msra.mxu0 0.0
    %1348 = vmatpush.msra.mxu0 0.0
    %1349 = vmatpush.msra.mxu0 0.0
    %1350 = vmatpush.msra.mxu0 0.0
    %1351 = vmatpush.msra.mxu0 0.0
    %1352 = vmatpush.msra.mxu0 0.0
    %1353 = vmatpush.msra.mxu0 0.0
    %1354 = vmatpush.msra.mxu0 0.0
    %1355 = vmatpush.msra.mxu0 0.0
    %1356 = vmatpush.msra.mxu0 0.0
    %1357 = vmatpush.msra.mxu0 %v62
    %1358 = vmatpush.msra.mxu0 %v61
    %1359 = vmatpush.msra.mxu0 %v60
    %1360 = vmatpush.msra.mxu0 %v59
    %1361 = vmatmul.f32.gmra.mxu0 %v1343
    %v1362 = vpop.f32.mrf.mxu0
    %v1363 = vadd.f32 %v1342, %v1362
    %1364 = vdwg.mxu0
    %vm1365 = vcmask 31744
    %1366 = vst.msk [vmem:[%s6] sm:$0xff] %vm1365, %v1363
    // Predicated region
    $region30: #{tpu_custom_call.1} parent=1 // pred_check
      _
    $region31: #{tpu_custom_call.1} parent=1 // pred_check_branch
      %1368 = sbr.rel (0) target = $region33
    $region32: #{tpu_custom_call.1} parent=1 // pred_region
      _
    $region33: #{tpu_custom_call.1} parent=1 // pred_fallthru
      _
    // Predicated region
    $region34: #{tpu_custom_call.1} parent=1 // pred_check
      _
    $region35: #{tpu_custom_call.1} parent=1 // pred_check_branch
      %1370 = sbr.rel (0) target = $region37
    $region36: #{tpu_custom_call.1} parent=1 // pred_region
      %1372 = vsyncadd [#allocation4], 0
      %s1373 = sshll.u32 [#allocation5], 4
      %s1374 = int_to_ptr.vmem [resolvable:$true] %s1373
      %s1375 = sshll.u32 %s7, 4
      %s1376 = int_to_ptr.hbm [resolvable:$true] %s1375
      %1381 = dma.vmem_to_hbm [thread:$0]  %s1374, 256, %s1376, [#allocation4], 128, 128, 8
    $region37: #{tpu_custom_call.1} parent=1 // pred_fallthru
      _
    // Predicated region
    $region38: #{tpu_custom_call.1} parent=1 // pred_check
      _
    $region39: #{tpu_custom_call.1} parent=1 // pred_check_branch
      %1383 = sbr.rel (0) target = $region41
    $region40: #{tpu_custom_call.1} parent=1 // pred_region
      _
    $region41: #{tpu_custom_call.1} parent=1 // pred_fallthru
      _
    // Predicated region
    $region42: #{tpu_custom_call.1} parent=1 // pred_check
      _
    $region43: #{tpu_custom_call.1} parent=1 // pred_check_branch
      %1385 = sbr.rel (0) target = $region45
    $region44: #{tpu_custom_call.1} parent=1 // pred_region
      %1387 = dma.done [#allocation4], 256
    $region45: #{tpu_custom_call.1} parent=1 // pred_fallthru
      _
    %1388 = vsyncpa [#allocation3], 1
    %1389 = vsyncpa [#allocation4], 1

</llo_original>
